<compile_context>
chip_gen: v6e
topology: v6e:2x2x1
jax: 0.10.0
libtpu: 0.0.40
codegen_flags: <defaults>
</compile_context>

<pallas_src>
from functools import partial

import numpy as np
import jax
import jax.numpy as jnp
from jax.experimental import pallas as pl
from jax.experimental.pallas import tpu as pltpu

HI = jax.lax.Precision.HIGHEST


def _silu(x):
    return x * jax.nn.sigmoid(x)


def _make_divisible(v, divisor, min_value=None):
    if min_value is None:
        min_value = divisor
    new_v = max(min_value, int(v + divisor / 2) // divisor * divisor)
    if new_v < 0.9 * v:
        new_v += divisor
    return new_v


def _packE_layout(C, S):
    """Column layout of the packed (E, ncols) per-expanded-channel slab."""
    widths = (("w1", C), ("dw", 9), ("se_w1", S), ("se_w2", S),
              ("se_b1", S), ("b1", 1), ("dwb", 1), ("se_b2", 1))
    off, o = {}, 0
    for name, n in widths:
        off[name] = (o, n)
        o += n
    return off, o


# ---------------------------------------------------------------------------
# Fused kernel: one grid step == one batch element; operands are (chan, H*W)
# ---------------------------------------------------------------------------
def _enc_mbconv_kernel(x_ref, mask_ref, pe_ref, gb_ref, wb_ref, out_ref,
                       *, H, W, C, S, use_res):
    HW = H * W
    off, _ = _packE_layout(C, S)

    def pe(name):                        # static lane slice of the per-E slab
        o, n = off[name]
        return pe_ref[:, o:o + n]

    x = x_ref[0]                                            # (C, HW)

    # --- GDN (inverse=False): y = x * rsqrt(gamma @ x^2 + beta)
    gamma = gb_ref[:, 0:C]                                  # (C, C)
    beta = gb_ref[:, C:C + 1]                               # (C, 1)
    norm = jnp.dot(gamma, x * x, precision=HI,
                   preferred_element_type=jnp.float32) + beta
    xg = x * jax.lax.rsqrt(norm)                            # (C, HW)

    # --- 1x1 expansion conv (+bias, no norm) + SiLU:   (E, C) @ (C, HW)
    h = jnp.dot(pe("w1"), xg, precision=HI,
                preferred_element_type=jnp.float32) + pe("b1")
    h = _silu(h)                                            # (E, HW)

    # --- 3x3 depthwise conv (stride 1, "same") + SiLU.
    #     Shifts on the flattened spatial axis via pltpu.roll (XLU slot) with
    #     precomputed 0/1 boundary masks.  roll(h, s)[p] == h[(p - s) mod HW],
    #     so shift = (-(dh*W + dw)) % HW gives result[p] = h[p + dh*W + dw].
    #     The centre tap (dh = dw = 0) is always valid -> no roll, no mask.
    dw_o = off["dw"][0]
    acc = h * pe_ref[:, dw_o + 4:dw_o + 5]
    for kh in range(3):
        for kw in range(3):
            k = kh * 3 + kw
            if k == 4:
                continue
            shift = (-((kh - 1) * W + (kw - 1))) % HW
            shifted = pltpu.roll(h, shift, 1)
            tap = pe_ref[:, dw_o + k:dw_o + k + 1]          # (E, 1)
            m = mask_ref[k:k + 1, :]                        # (1, HW)
            acc = acc + (shifted * m) * tap
    acc = _silu(acc + pe("dwb"))                            # (E, HW)

    # --- Squeeze-Excitation on VPU/XLU (avoid M=1 MXU matmuls)
    pooled = jnp.sum(acc, axis=1, keepdims=True) * (1.0 / HW)           # (E,1)
    o_b1, _ = off["se_b1"]
    se_b1 = pe_ref[0:1, o_b1:o_b1 + S]                                  # (1,S)
    s1 = jnp.sum(pe("se_w1") * pooled, axis=0, keepdims=True) + se_b1
    s1 = _silu(s1)                                                      # (1,S)
    s2 = jnp.sum(pe("se_w2") * s1, axis=1, keepdims=True) + pe("se_b2")
    acc = acc * jax.nn.sigmoid(s2)                                      # (E,HW)

    # --- 1x1 projection (+bias, no activation):       (Cout, E) @ (E, HW)
    E = pe_ref.shape[0]
    out = jnp.dot(wb_ref[:, 0:E], acc, precision=HI,
                  preferred_element_type=jnp.float32) + wb_ref[:, E:E + 1]
    if use_res:
        # PyTorch forward reassigns `input = self.norm_layer(input)` before the
        # block, so the residual adds the GDN output (xg), not the raw input.
        out = out + xg
    out_ref[0] = out


# ---------------------------------------------------------------------------
# Wrapper (NCHW in / NCHW out; the (B,C,H,W)->(B,C,H*W) reshape is free)
# ---------------------------------------------------------------------------
def _enc_mbconv_forward(x_nchw, params, *, use_res):
    x = x_nchw.astype(jnp.float32)
    B, C, H, W = x.shape
    HW = H * W
    x2d = x.reshape(B, C, HW)
    E = params["w1"].shape[0]
    S = params["se_w1"].shape[1]
    Cout = params["wp"].shape[0]

    # 0/1 validity masks of the nine 3x3 taps on the flattened spatial axis
    rr = np.repeat(np.arange(H), W)
    cc = np.tile(np.arange(W), H)
    mk = np.zeros((9, HW), np.float32)
    for kh in range(3):
        for kw in range(3):
            ok = ((rr + kh - 1 >= 0) & (rr + kh - 1 < H)
                  & (cc + kw - 1 >= 0) & (cc + kw - 1 < W))
            mk[kh * 3 + kw] = ok
    mask = jnp.asarray(mk)

    # Pack the many tiny parameter tensors into three slabs so the kernel has
    # 5 operands instead of 14 (fewer DMA descriptors / BlockSpecs at launch).
    off, ncols = _packE_layout(C, S)
    pieces = {
        "w1": params["w1"], "dw": params["dw"],
        "se_w1": params["se_w1"], "se_w2": params["se_w2"],
        "se_b1": jnp.broadcast_to(params["se_b1"], (E, S)),
        "b1": params["b1"], "dwb": params["dwb"], "se_b2": params["se_b2"],
    }
    packE = jnp.concatenate([pieces[k] for k in off], axis=1)     # (E, ncols)
    assert packE.shape == (E, ncols)
    packGB = jnp.concatenate([params["gamma"], params["beta"]], axis=1)
    packWB = jnp.concatenate([params["wp"], params["bp"]], axis=1)

    def full(a):  # whole (small) array, constant index map -> DMA'd once
        return pl.BlockSpec(a.shape, lambda b, _n=a.ndim: (0,) * _n)

    kernel = partial(_enc_mbconv_kernel, H=H, W=W, C=C, S=S, use_res=use_res)
    # TODO(synk): for much larger H*W add a spatial tile dimension to the grid
    # (with a 1-row halo) so VMEM stays bounded on v7x; trivial at 16x16.
    out = pl.pallas_call(
        kernel,
        out_shape=jax.ShapeDtypeStruct((B, Cout, HW), jnp.float32),
        grid=(B,),
        in_specs=[pl.BlockSpec((1, C, HW), lambda b: (b, 0, 0)),
                  full(mask), full(packE), full(packGB), full(packWB)],
        out_specs=pl.BlockSpec((1, Cout, HW), lambda b: (b, 0, 0)),
        compiler_params=pltpu.CompilerParams(
            dimension_semantics=("parallel",)),   # batch -> both TCs on v7x
    )(x2d, mask, packE, packGB, packWB)

    return out.reshape(B, Cout, H, W)


enc_mbconv_forward = jax.jit(_enc_mbconv_forward, static_argnames=("use_res",))


# ---------------------------------------------------------------------------
# Plain-JAX reference (independent implementation, for verification)
# ---------------------------------------------------------------------------
def ref_forward(x, p, *, use_res):
    x = x.astype(jnp.float32)
    B, C, H, W = x.shape
    E = p["w1"].shape[0]
    Cout = p["wp"].shape[0]
    norm = jnp.einsum("cj,bjhw->bchw", p["gamma"], x * x, precision=HI) \
        + p["beta"].reshape(1, C, 1, 1)
    xg = x * jax.lax.rsqrt(norm)
    h = _silu(jnp.einsum("ec,bchw->behw", p["w1"], xg, precision=HI)
              + p["b1"].reshape(1, E, 1, 1))
    wdw = p["dw"].reshape(E, 1, 3, 3)
    h2 = jax.lax.conv_general_dilated(
        h, wdw, (1, 1), "SAME",
        dimension_numbers=("NCHW", "OIHW", "NCHW"),
        feature_group_count=E, precision=HI)
    h2 = _silu(h2 + p["dwb"].reshape(1, E, 1, 1))
    pooled = jnp.mean(h2, axis=(2, 3))                                   # (B, E)
    s = _silu(jnp.einsum("be,es->bs", pooled, p["se_w1"], precision=HI)
              + p["se_b1"][0])
    s = jax.nn.sigmoid(jnp.einsum("bs,es->be", s, p["se_w2"], precision=HI)
                       + p["se_b2"][:, 0])
    h2 = h2 * s[:, :, None, None]
    out = jnp.einsum("oe,behw->bohw", p["wp"], h2, precision=HI) \
        + p["bp"].reshape(1, Cout, 1, 1)
    if use_res:
        out = out + xg
    return out


if __name__ == "__main__":
    # MBConvConfig(expand_ratio=4.0, kernel=3, stride=1, in=8, out=8, layers=1)
    C_in, C_out = 8, 8
    expand_ratio, kernel_sz, stride = 4.0, 3, 1
    E = _make_divisible(C_in * expand_ratio, 8)      # expanded channels = 32
    S = max(1, C_in // 4)                            # squeeze channels   = 2
    use_res = (stride == 1 and C_in == C_out)        # True
    B, H, W = 2, 16, 16

    key = jax.random.PRNGKey(0)
    ks = jax.random.split(key, 12)
    # GDN params: NonNegativeParametrizer replaced by deterministic positive
    # init (beta = 1, gamma = 0.1*I + small positive off-diagonal).
    params = {
        "gamma": 0.1 * jnp.eye(C_in, dtype=jnp.float32)
                 + 0.01 * jnp.abs(jax.random.normal(ks[0], (C_in, C_in), jnp.float32)),
        "beta":  jnp.ones((C_in, 1), jnp.float32),
        # expand 1x1 conv weight (E, C)  == torch weight[:, :, 0, 0]
        "w1":  0.1 * jax.random.normal(ks[1], (E, C_in), jnp.float32),
        "b1":  0.05 * jax.random.normal(ks[2], (E, 1), jnp.float32),
        # depthwise 3x3 conv (E, 9): per-channel taps flattened as kh*3+kw
        "dw":  0.1 * jax.random.normal(ks[3], (E, 9), jnp.float32),
        "dwb": 0.05 * jax.random.normal(ks[4], (E, 1), jnp.float32),
        # SqueezeExcitation fc1/fc2 (1x1 convs), stored as (E, S)
        "se_w1": 0.1 * jax.random.normal(ks[5], (E, S), jnp.float32),
        "se_b1": 0.05 * jax.random.normal(ks[6], (1, S), jnp.float32),
        "se_w2": 0.1 * jax.random.normal(ks[7], (E, S), jnp.float32),
        "se_b2": 0.05 * jax.random.normal(ks[8], (E, 1), jnp.float32),
        # project 1x1 conv weight (Cout, E) == torch weight[:, :, 0, 0]
        "wp":  0.1 * jax.random.normal(ks[9], (C_out, E), jnp.float32),
        "bp":  0.05 * jax.random.normal(ks[10], (C_out, 1), jnp.float32),
    }

    x = jax.random.normal(ks[11], (B, C_in, H, W), jnp.float32)      # NCHW

    # TODO(synk): self.stochastic_depth is constructed in __init__ but never
    # invoked in EncMBConv.forward, so it is intentionally omitted here.

    out = jax.block_until_ready(enc_mbconv_forward(x, params, use_res=use_res))
    ref = jax.block_until_ready(ref_forward(x, params, use_res=use_res))
    np.testing.assert_allclose(np.asarray(out), np.asarray(ref),
                               rtol=1e-3, atol=1e-3)

    print("KERNEL_OK")
</pallas_src>

<mosaic_0001>
module attributes {stable_mosaic.version = 11 : i64} {
  func.func @_enc_mbconv_kernel(%arg0: i32, %arg1: memref<1x8x256xf32, #tpu.memory_space<vmem>>, %arg2: memref<9x256xf32, #tpu.memory_space<vmem>>, %arg3: memref<32x26xf32, #tpu.memory_space<vmem>>, %arg4: memref<8x9xf32, #tpu.memory_space<vmem>>, %arg5: memref<8x33xf32, #tpu.memory_space<vmem>>, %arg6: memref<1x8x256xf32, #tpu.memory_space<vmem>>) attributes {dimension_semantics = [#tpu.dimension_semantics<parallel>], iteration_bounds = array<i64: 2>, scalar_prefetch = 0 : i64, scratch_operands = 0 : i64, tpu.core_type = #tpu.core_type<tc>, window_params = [{transform_indices = @transform_0, window_bounds = array<i64: 1, 8, 256>}, {pipeline_mode = #tpu.pipeline_mode<synchronous>, transform_indices = @transform_1, window_bounds = array<i64: 9, 256>}, {pipeline_mode = #tpu.pipeline_mode<synchronous>, transform_indices = @transform_2, window_bounds = array<i64: 32, 26>}, {pipeline_mode = #tpu.pipeline_mode<synchronous>, transform_indices = @transform_3, window_bounds = array<i64: 8, 9>}, {pipeline_mode = #tpu.pipeline_mode<synchronous>, transform_indices = @transform_4, window_bounds = array<i64: 8, 33>}, {transform_indices = @transform_5, window_bounds = array<i64: 1, 8, 256>}]} {
    %c0 = arith.constant 0 : index
    %c0_0 = arith.constant 0 : index
    %c0_1 = arith.constant 0 : index
    %0 = vector.load %arg1[%c0, %c0_0, %c0_1] : memref<1x8x256xf32, #tpu.memory_space<vmem>>, vector<1x8x256xf32>
    %1 = vector.shape_cast %0 : vector<1x8x256xf32> to vector<8x256xf32>
    %c0_2 = arith.constant 0 : index
    %c0_3 = arith.constant 0 : index
    %2 = vector.load %arg4[%c0_2, %c0_3] : memref<8x9xf32, #tpu.memory_space<vmem>>, vector<8x8xf32>
    %c0_4 = arith.constant 0 : index
    %c8 = arith.constant 8 : index
    %3 = vector.load %arg4[%c0_4, %c8] : memref<8x9xf32, #tpu.memory_space<vmem>>, vector<8x1xf32>
    %4 = arith.mulf %1, %1 : vector<8x256xf32>
    %cst = arith.constant dense<0.000000e+00> : vector<8x256xf32>
    %5 = tpu.matmul %2, %4, %cst {dimension_numbers = #tpu.dot_dimension_numbers<[1], [0], [0], [1], [0, 0, 1, 1], [], []>, precision = #tpu.contract_precision<fp32>} : vector<8x8xf32>, vector<8x256xf32>, vector<8x256xf32> -> vector<8x256xf32>
    %6 = vector.broadcast %3 : vector<8x1xf32> to vector<8x256xf32>
    %7 = arith.addf %5, %6 : vector<8x256xf32>
    %8 = math.rsqrt %7 : vector<8x256xf32>
    %9 = arith.mulf %1, %8 : vector<8x256xf32>
    %c0_5 = arith.constant 0 : index
    %c0_6 = arith.constant 0 : index
    %10 = vector.load %arg3[%c0_5, %c0_6] : memref<32x26xf32, #tpu.memory_space<vmem>>, vector<32x8xf32>
    %cst_7 = arith.constant dense<0.000000e+00> : vector<32x256xf32>
    %11 = tpu.matmul %10, %9, %cst_7 {dimension_numbers = #tpu.dot_dimension_numbers<[1], [0], [0], [1], [0, 0, 1, 1], [], []>, precision = #tpu.contract_precision<fp32>} : vector<32x8xf32>, vector<8x256xf32>, vector<32x256xf32> -> vector<32x256xf32>
    %c0_8 = arith.constant 0 : index
    %c23 = arith.constant 23 : index
    %12 = vector.load %arg3[%c0_8, %c23] : memref<32x26xf32, #tpu.memory_space<vmem>>, vector<32x1xf32>
    %13 = vector.broadcast %12 : vector<32x1xf32> to vector<32x256xf32>
    %14 = arith.addf %11, %13 : vector<32x256xf32>
    %15 = arith.negf %14 : vector<32x256xf32>
    %16 = math.exp %15 : vector<32x256xf32>
    %cst_9 = arith.constant 1.000000e+00 : f32
    %17 = vector.broadcast %cst_9 : f32 to vector<32x256xf32>
    %18 = arith.addf %17, %16 : vector<32x256xf32>
    %19 = arith.divf %17, %18 : vector<32x256xf32>
    %20 = arith.mulf %14, %19 : vector<32x256xf32>
    %c0_10 = arith.constant 0 : index
    %c12 = arith.constant 12 : index
    %21 = vector.load %arg3[%c0_10, %c12] : memref<32x26xf32, #tpu.memory_space<vmem>>, vector<32x1xf32>
    %22 = vector.broadcast %21 : vector<32x1xf32> to vector<32x256xf32>
    %23 = arith.mulf %20, %22 : vector<32x256xf32>
    %c17_i32 = arith.constant 17 : i32
    %24 = tpu.dynamic_rotate %20 by %c17_i32 dim 1 : vector<32x256xf32>, i32 -> vector<32x256xf32>
    %c0_11 = arith.constant 0 : index
    %c8_12 = arith.constant 8 : index
    %25 = vector.load %arg3[%c0_11, %c8_12] : memref<32x26xf32, #tpu.memory_space<vmem>>, vector<32x1xf32>
    %c0_13 = arith.constant 0 : index
    %c0_14 = arith.constant 0 : index
    %26 = vector.load %arg2[%c0_13, %c0_14] : memref<9x256xf32, #tpu.memory_space<vmem>>, vector<1x256xf32>
    %27 = vector.broadcast %26 : vector<1x256xf32> to vector<32x256xf32>
    %28 = arith.mulf %24, %27 : vector<32x256xf32>
    %29 = vector.broadcast %25 : vector<32x1xf32> to vector<32x256xf32>
    %30 = arith.mulf %28, %29 : vector<32x256xf32>
    %31 = arith.addf %23, %30 : vector<32x256xf32>
    %c16_i32 = arith.constant 16 : i32
    %32 = tpu.dynamic_rotate %20 by %c16_i32 dim 1 : vector<32x256xf32>, i32 -> vector<32x256xf32>
    %c0_15 = arith.constant 0 : index
    %c9 = arith.constant 9 : index
    %33 = vector.load %arg3[%c0_15, %c9] : memref<32x26xf32, #tpu.memory_space<vmem>>, vector<32x1xf32>
    %c1 = arith.constant 1 : index
    %c0_16 = arith.constant 0 : index
    %34 = vector.load %arg2[%c1, %c0_16] : memref<9x256xf32, #tpu.memory_space<vmem>>, vector<1x256xf32>
    %35 = vector.broadcast %34 : vector<1x256xf32> to vector<32x256xf32>
    %36 = arith.mulf %32, %35 : vector<32x256xf32>
    %37 = vector.broadcast %33 : vector<32x1xf32> to vector<32x256xf32>
    %38 = arith.mulf %36, %37 : vector<32x256xf32>
    %39 = arith.addf %31, %38 : vector<32x256xf32>
    %c15_i32 = arith.constant 15 : i32
    %40 = tpu.dynamic_rotate %20 by %c15_i32 dim 1 : vector<32x256xf32>, i32 -> vector<32x256xf32>
    %c0_17 = arith.constant 0 : index
    %c10 = arith.constant 10 : index
    %41 = vector.load %arg3[%c0_17, %c10] : memref<32x26xf32, #tpu.memory_space<vmem>>, vector<32x1xf32>
    %c2 = arith.constant 2 : index
    %c0_18 = arith.constant 0 : index
    %42 = vector.load %arg2[%c2, %c0_18] : memref<9x256xf32, #tpu.memory_space<vmem>>, vector<1x256xf32>
    %43 = vector.broadcast %42 : vector<1x256xf32> to vector<32x256xf32>
    %44 = arith.mulf %40, %43 : vector<32x256xf32>
    %45 = vector.broadcast %41 : vector<32x1xf32> to vector<32x256xf32>
    %46 = arith.mulf %44, %45 : vector<32x256xf32>
    %47 = arith.addf %39, %46 : vector<32x256xf32>
    %c1_i32 = arith.constant 1 : i32
    %48 = tpu.dynamic_rotate %20 by %c1_i32 dim 1 : vector<32x256xf32>, i32 -> vector<32x256xf32>
    %c0_19 = arith.constant 0 : index
    %c11 = arith.constant 11 : index
    %49 = vector.load %arg3[%c0_19, %c11] : memref<32x26xf32, #tpu.memory_space<vmem>>, vector<32x1xf32>
    %c3 = arith.constant 3 : index
    %c0_20 = arith.constant 0 : index
    %50 = vector.load %arg2[%c3, %c0_20] : memref<9x256xf32, #tpu.memory_space<vmem>>, vector<1x256xf32>
    %51 = vector.broadcast %50 : vector<1x256xf32> to vector<32x256xf32>
    %52 = arith.mulf %48, %51 : vector<32x256xf32>
    %53 = vector.broadcast %49 : vector<32x1xf32> to vector<32x256xf32>
    %54 = arith.mulf %52, %53 : vector<32x256xf32>
    %55 = arith.addf %47, %54 : vector<32x256xf32>
    %c255_i32 = arith.constant 255 : i32
    %56 = tpu.dynamic_rotate %20 by %c255_i32 dim 1 : vector<32x256xf32>, i32 -> vector<32x256xf32>
    %c0_21 = arith.constant 0 : index
    %c13 = arith.constant 13 : index
    %57 = vector.load %arg3[%c0_21, %c13] : memref<32x26xf32, #tpu.memory_space<vmem>>, vector<32x1xf32>
    %c5 = arith.constant 5 : index
    %c0_22 = arith.constant 0 : index
    %58 = vector.load %arg2[%c5, %c0_22] : memref<9x256xf32, #tpu.memory_space<vmem>>, vector<1x256xf32>
    %59 = vector.broadcast %58 : vector<1x256xf32> to vector<32x256xf32>
    %60 = arith.mulf %56, %59 : vector<32x256xf32>
    %61 = vector.broadcast %57 : vector<32x1xf32> to vector<32x256xf32>
    %62 = arith.mulf %60, %61 : vector<32x256xf32>
    %63 = arith.addf %55, %62 : vector<32x256xf32>
    %c241_i32 = arith.constant 241 : i32
    %64 = tpu.dynamic_rotate %20 by %c241_i32 dim 1 : vector<32x256xf32>, i32 -> vector<32x256xf32>
    %c0_23 = arith.constant 0 : index
    %c14 = arith.constant 14 : index
    %65 = vector.load %arg3[%c0_23, %c14] : memref<32x26xf32, #tpu.memory_space<vmem>>, vector<32x1xf32>
    %c6 = arith.constant 6 : index
    %c0_24 = arith.constant 0 : index
    %66 = vector.load %arg2[%c6, %c0_24] : memref<9x256xf32, #tpu.memory_space<vmem>>, vector<1x256xf32>
    %67 = vector.broadcast %66 : vector<1x256xf32> to vector<32x256xf32>
    %68 = arith.mulf %64, %67 : vector<32x256xf32>
    %69 = vector.broadcast %65 : vector<32x1xf32> to vector<32x256xf32>
    %70 = arith.mulf %68, %69 : vector<32x256xf32>
    %71 = arith.addf %63, %70 : vector<32x256xf32>
    %c240_i32 = arith.constant 240 : i32
    %72 = tpu.dynamic_rotate %20 by %c240_i32 dim 1 : vector<32x256xf32>, i32 -> vector<32x256xf32>
    %c0_25 = arith.constant 0 : index
    %c15 = arith.constant 15 : index
    %73 = vector.load %arg3[%c0_25, %c15] : memref<32x26xf32, #tpu.memory_space<vmem>>, vector<32x1xf32>
    %c7 = arith.constant 7 : index
    %c0_26 = arith.constant 0 : index
    %74 = vector.load %arg2[%c7, %c0_26] : memref<9x256xf32, #tpu.memory_space<vmem>>, vector<1x256xf32>
    %75 = vector.broadcast %74 : vector<1x256xf32> to vector<32x256xf32>
    %76 = arith.mulf %72, %75 : vector<32x256xf32>
    %77 = vector.broadcast %73 : vector<32x1xf32> to vector<32x256xf32>
    %78 = arith.mulf %76, %77 : vector<32x256xf32>
    %79 = arith.addf %71, %78 : vector<32x256xf32>
    %c239_i32 = arith.constant 239 : i32
    %80 = tpu.dynamic_rotate %20 by %c239_i32 dim 1 : vector<32x256xf32>, i32 -> vector<32x256xf32>
    %c0_27 = arith.constant 0 : index
    %c16 = arith.constant 16 : index
    %81 = vector.load %arg3[%c0_27, %c16] : memref<32x26xf32, #tpu.memory_space<vmem>>, vector<32x1xf32>
    %c8_28 = arith.constant 8 : index
    %c0_29 = arith.constant 0 : index
    %82 = vector.load %arg2[%c8_28, %c0_29] : memref<9x256xf32, #tpu.memory_space<vmem>>, vector<1x256xf32>
    %83 = vector.broadcast %82 : vector<1x256xf32> to vector<32x256xf32>
    %84 = arith.mulf %80, %83 : vector<32x256xf32>
    %85 = vector.broadcast %81 : vector<32x1xf32> to vector<32x256xf32>
    %86 = arith.mulf %84, %85 : vector<32x256xf32>
    %87 = arith.addf %79, %86 : vector<32x256xf32>
    %c0_30 = arith.constant 0 : index
    %c24 = arith.constant 24 : index
    %88 = vector.load %arg3[%c0_30, %c24] : memref<32x26xf32, #tpu.memory_space<vmem>>, vector<32x1xf32>
    %89 = vector.broadcast %88 : vector<32x1xf32> to vector<32x256xf32>
    %90 = arith.addf %87, %89 : vector<32x256xf32>
    %91 = arith.negf %90 : vector<32x256xf32>
    %92 = math.exp %91 : vector<32x256xf32>
    %cst_31 = arith.constant 1.000000e+00 : f32
    %93 = vector.broadcast %cst_31 : f32 to vector<32x256xf32>
    %94 = arith.addf %93, %92 : vector<32x256xf32>
    %95 = arith.divf %93, %94 : vector<32x256xf32>
    %96 = arith.mulf %90, %95 : vector<32x256xf32>
    %cst_32 = arith.constant dense<0.000000e+00> : vector<32xf32>
    %97 = vector.multi_reduction <add>, %96, %cst_32 [1] : vector<32x256xf32> to vector<32xf32>
    %98 = vector.shape_cast %97 : vector<32xf32> to vector<32x1xf32>
    %cst_33 = arith.constant 3.906250e-03 : f32
    %99 = vector.broadcast %cst_33 : f32 to vector<32x1xf32>
    %100 = arith.mulf %98, %99 : vector<32x1xf32>
    %c0_34 = arith.constant 0 : index
    %c21 = arith.constant 21 : index
    %101 = vector.load %arg3[%c0_34, %c21] : memref<32x26xf32, #tpu.memory_space<vmem>>, vector<1x2xf32>
    %c0_35 = arith.constant 0 : index
    %c17 = arith.constant 17 : index
    %102 = vector.load %arg3[%c0_35, %c17] : memref<32x26xf32, #tpu.memory_space<vmem>>, vector<32x2xf32>
    %103 = vector.broadcast %100 : vector<32x1xf32> to vector<32x2xf32>
    %104 = arith.mulf %102, %103 : vector<32x2xf32>
    %cst_36 = arith.constant dense<0.000000e+00> : vector<2xf32>
    %105 = vector.multi_reduction <add>, %104, %cst_36 [0] : vector<32x2xf32> to vector<2xf32>
    %106 = vector.shape_cast %105 : vector<2xf32> to vector<1x2xf32>
    %107 = arith.addf %106, %101 : vector<1x2xf32>
    %108 = arith.negf %107 : vector<1x2xf32>
    %109 = math.exp %108 : vector<1x2xf32>
    %cst_37 = arith.constant 1.000000e+00 : f32
    %110 = vector.broadcast %cst_37 : f32 to vector<1x2xf32>
    %111 = arith.addf %110, %109 : vector<1x2xf32>
    %112 = arith.divf %110, %111 : vector<1x2xf32>
    %113 = arith.mulf %107, %112 : vector<1x2xf32>
    %c0_38 = arith.constant 0 : index
    %c19 = arith.constant 19 : index
    %114 = vector.load %arg3[%c0_38, %c19] : memref<32x26xf32, #tpu.memory_space<vmem>>, vector<32x2xf32>
    %115 = vector.broadcast %113 : vector<1x2xf32> to vector<32x2xf32>
    %116 = arith.mulf %114, %115 : vector<32x2xf32>
    %cst_39 = arith.constant dense<0.000000e+00> : vector<32xf32>
    %117 = vector.multi_reduction <add>, %116, %cst_39 [1] : vector<32x2xf32> to vector<32xf32>
    %118 = vector.shape_cast %117 : vector<32xf32> to vector<32x1xf32>
    %c0_40 = arith.constant 0 : index
    %c25 = arith.constant 25 : index
    %119 = vector.load %arg3[%c0_40, %c25] : memref<32x26xf32, #tpu.memory_space<vmem>>, vector<32x1xf32>
    %120 = arith.addf %118, %119 : vector<32x1xf32>
    %121 = arith.negf %120 : vector<32x1xf32>
    %122 = math.exp %121 : vector<32x1xf32>
    %cst_41 = arith.constant 1.000000e+00 : f32
    %123 = vector.broadcast %cst_41 : f32 to vector<32x1xf32>
    %124 = arith.addf %123, %122 : vector<32x1xf32>
    %125 = arith.divf %123, %124 : vector<32x1xf32>
    %126 = vector.broadcast %125 : vector<32x1xf32> to vector<32x256xf32>
    %127 = arith.mulf %96, %126 : vector<32x256xf32>
    %c0_42 = arith.constant 0 : index
    %c0_43 = arith.constant 0 : index
    %128 = vector.load %arg5[%c0_42, %c0_43] : memref<8x33xf32, #tpu.memory_space<vmem>>, vector<8x32xf32>
    %cst_44 = arith.constant dense<0.000000e+00> : vector<8x256xf32>
    %129 = tpu.matmul %128, %127, %cst_44 {dimension_numbers = #tpu.dot_dimension_numbers<[1], [0], [0], [1], [0, 0, 1, 1], [], []>, precision = #tpu.contract_precision<fp32>} : vector<8x32xf32>, vector<32x256xf32>, vector<8x256xf32> -> vector<8x256xf32>
    %c0_45 = arith.constant 0 : index
    %c32 = arith.constant 32 : index
    %130 = vector.load %arg5[%c0_45, %c32] : memref<8x33xf32, #tpu.memory_space<vmem>>, vector<8x1xf32>
    %131 = vector.broadcast %130 : vector<8x1xf32> to vector<8x256xf32>
    %132 = arith.addf %129, %131 : vector<8x256xf32>
    %133 = arith.addf %132, %9 : vector<8x256xf32>
    %c0_46 = arith.constant 0 : index
    %c0_47 = arith.constant 0 : index
    %c0_48 = arith.constant 0 : index
    %134 = vector.load %arg6[%c0_46, %c0_47, %c0_48] : memref<1x8x256xf32, #tpu.memory_space<vmem>>, vector<1x8x256xf32>
    %135 = vector.shape_cast %134 : vector<1x8x256xf32> to vector<8x256xf32>
    %136 = vector.shape_cast %133 : vector<8x256xf32> to vector<1x8x256xf32>
    tpu.vector_store %arg6[%c0_46, %c0_47, %c0_48], %136 {strides = array<i32>} : memref<1x8x256xf32, #tpu.memory_space<vmem>>, vector<1x8x256xf32>,
    return
  }
  func.func @transform_0(%arg0: i32) -> (i32, i32, i32) {
    %c0_i32 = arith.constant 0 : i32
    %c0_i32_0 = arith.constant 0 : i32
    %c0_i32_1 = arith.constant 0 : i32
    return %arg0, %c0_i32, %c0_i32_0 : i32, i32, i32
  }
  func.func @transform_1(%arg0: i32) -> (i32, i32) {
    %c0_i32 = arith.constant 0 : i32
    %c0_i32_0 = arith.constant 0 : i32
    %c0_i32_1 = arith.constant 0 : i32
    return %c0_i32, %c0_i32_0 : i32, i32
  }
  func.func @transform_2(%arg0: i32) -> (i32, i32) {
    %c0_i32 = arith.constant 0 : i32
    %c0_i32_0 = arith.constant 0 : i32
    %c0_i32_1 = arith.constant 0 : i32
    return %c0_i32, %c0_i32_0 : i32, i32
  }
  func.func @transform_3(%arg0: i32) -> (i32, i32) {
    %c0_i32 = arith.constant 0 : i32
    %c0_i32_0 = arith.constant 0 : i32
    %c0_i32_1 = arith.constant 0 : i32
    return %c0_i32, %c0_i32_0 : i32, i32
  }
  func.func @transform_4(%arg0: i32) -> (i32, i32) {
    %c0_i32 = arith.constant 0 : i32
    %c0_i32_0 = arith.constant 0 : i32
    %c0_i32_1 = arith.constant 0 : i32
    return %c0_i32, %c0_i32_0 : i32, i32
  }
  func.func @transform_5(%arg0: i32) -> (i32, i32, i32) {
    %c0_i32 = arith.constant 0 : i32
    %c0_i32_0 = arith.constant 0 : i32
    %c0_i32_1 = arith.constant 0 : i32
    return %arg0, %c0_i32, %c0_i32_0 : i32, i32, i32
  }
}

</mosaic_0001>

<llo_original>
// kernel: _enc_mbconv_forward.1
$region0: #{_enc_mbconv_forward.1}
  #allocation0 [shape = 'u32[]', space=smem, size = 0x4, offset = 0x4, fixed_abs, tag = 'smem constant byte address 0x4 - core index']
  #allocation1 [shape = 'u32[144,128]{1,0:T(1,128)}', space=vmem, size = 0x12000, scoped, tag = 'internal scratch']
  %s0 = inlined_call_operand.vmem [shape: f32[2,8,256], index: 0, kind: input, shape index: {}]
  %s1 = inlined_call_operand.vmem [shape: f32[9,256], index: 1, kind: input, shape index: {}]
  %s2 = inlined_call_operand.vmem [shape: f32[32,26], index: 2, kind: input, shape index: {}]
  %s3 = inlined_call_operand.vmem [shape: f32[8,9], index: 3, kind: input, shape index: {}]
  %s4 = inlined_call_operand.vmem [shape: f32[8,33], index: 4, kind: input, shape index: {}]
  %s5 = inlined_call_operand.vmem [shape: f32[2,8,256], index: 5, kind: output, shape index: {}]
  %s6 = sld [smem:[#allocation0]]
  $region53: #{_enc_mbconv_forward.1} parent=0
    _
  %s8 = ssub.s32 1, %s6
  %s9 = scalar_select 0, %s8, %s6
  loop: start=0, step=1, limit=4
  $region2: #{_enc_mbconv_forward.1} parent=0 // loop_pre_header
    _
  $region3: #{_enc_mbconv_forward.1} parent=0 // loop_header
    %s11 = sphi 0, %s15
    %p12 = scmp.ge.s32.totalorder %s11, 4
    %s21 = sphi 0, %s23
    %s24 = sphi 0, %s21
    %s25 = sphi 0, %s24
    %s41 = sphi 0, %s25
    %s45 = sphi 0, %s45
    %s47 = sphi 0, %s45
    %s48 = sphi 0, %s47
    %s62 = sphi 0, %s48
    %s66 = sphi 0, %s66
    %s68 = sphi 0, %s66
    %s69 = sphi 0, %s68
    %s83 = sphi 0, %s69
    %s87 = sphi 0, %s87
    %s89 = sphi 0, %s87
    %s90 = sphi 0, %s89
    %s104 = sphi 0, %s90
    %s108 = sphi 0, %s108
    %s110 = sphi 0, %s108
    %s111 = sphi 0, %s110
    %s125 = sphi 0, %s111
    %s131 = sphi 0, %s133
    %s134 = sphi 0, %s131
    %s135 = sphi 0, %s134
    %s151 = sphi 0, %s135
  $region4: #{_enc_mbconv_forward.1} parent=0 // loop_header_branch
    %14 = sbr.rel (%p12) target = $region8
  $region5: #{_enc_mbconv_forward.1} parent=0 // loop_body
    %s16 = ssub.s32 %s11, 1
    %s17 = ssub.s32 %s11, 2
    %s18 = sadd.s32 %s11, 1
    %s19 = ssub.s32 %s11, %s18
    %p20 = scmp.eq.s32.totalorder %s19, 0
    %s22 = sadd.s32 %s21, 1
    %s23 = scalar_select %p20, %s21, %s22
    %p26 = pneg %p20
    %p27 = scmp.eq.s32.totalorder %s11, 1
    %p28 = por %p26, %p27
    %p29 = scmp.ne.s32.totalorder %s21, %s24
    %p30 = scmp.eq.s32.totalorder %s11, 0
    %p31 = por %p29, %p30
    %p32 = scmp.ne.s32.totalorder %s21, %s24
    %p33 = scmp.eq.s32.totalorder %s16, 1
    %p34 = por %p32, %p33
    %p35 = scmp.ne.s32.totalorder %s24, %s25
    %p36 = scmp.eq.s32.totalorder %s16, 0
    %p37 = por %p35, %p36
    %p38 = scmp.ne.s32.totalorder %s24, %s25
    %p39 = scmp.eq.s32.totalorder %s17, 1
    %p40 = por %p38, %p39
    %p42 = scmp.ne.s32.totalorder %s25, %s41
    %p43 = scmp.eq.s32.totalorder %s17, 0
    %p44 = por %p42, %p43
    %s46 = sadd.s32 %s45, 1
    %p49 = scmp.eq.s32.totalorder %s11, 1
    %p50 = scmp.ne.s32.totalorder %s45, %s47
    %p51 = scmp.eq.s32.totalorder %s11, 0
    %p52 = por %p50, %p51
    %p53 = scmp.ne.s32.totalorder %s45, %s47
    %p54 = scmp.eq.s32.totalorder %s16, 1
    %p55 = por %p53, %p54
    %p56 = scmp.ne.s32.totalorder %s47, %s48
    %p57 = scmp.eq.s32.totalorder %s16, 0
    %p58 = por %p56, %p57
    %p59 = scmp.ne.s32.totalorder %s47, %s48
    %p60 = scmp.eq.s32.totalorder %s17, 1
    %p61 = por %p59, %p60
    %p63 = scmp.ne.s32.totalorder %s48, %s62
    %p64 = scmp.eq.s32.totalorder %s17, 0
    %p65 = por %p63, %p64
    %s67 = sadd.s32 %s66, 1
    %p70 = scmp.eq.s32.totalorder %s11, 1
    %p71 = scmp.ne.s32.totalorder %s66, %s68
    %p72 = scmp.eq.s32.totalorder %s11, 0
    %p73 = por %p71, %p72
    %p74 = scmp.ne.s32.totalorder %s66, %s68
    %p75 = scmp.eq.s32.totalorder %s16, 1
    %p76 = por %p74, %p75
    %p77 = scmp.ne.s32.totalorder %s68, %s69
    %p78 = scmp.eq.s32.totalorder %s16, 0
    %p79 = por %p77, %p78
    %p80 = scmp.ne.s32.totalorder %s68, %s69
    %p81 = scmp.eq.s32.totalorder %s17, 1
    %p82 = por %p80, %p81
    %p84 = scmp.ne.s32.totalorder %s69, %s83
    %p85 = scmp.eq.s32.totalorder %s17, 0
    %p86 = por %p84, %p85
    %s88 = sadd.s32 %s87, 1
    %p91 = scmp.eq.s32.totalorder %s11, 1
    %p92 = scmp.ne.s32.totalorder %s87, %s89
    %p93 = scmp.eq.s32.totalorder %s11, 0
    %p94 = por %p92, %p93
    %p95 = scmp.ne.s32.totalorder %s87, %s89
    %p96 = scmp.eq.s32.totalorder %s16, 1
    %p97 = por %p95, %p96
    %p98 = scmp.ne.s32.totalorder %s89, %s90
    %p99 = scmp.eq.s32.totalorder %s16, 0
    %p100 = por %p98, %p99
    %p101 = scmp.ne.s32.totalorder %s89, %s90
    %p102 = scmp.eq.s32.totalorder %s17, 1
    %p103 = por %p101, %p102
    %p105 = scmp.ne.s32.totalorder %s90, %s104
    %p106 = scmp.eq.s32.totalorder %s17, 0
    %p107 = por %p105, %p106
    %s109 = sadd.s32 %s108, 1
    %p112 = scmp.eq.s32.totalorder %s11, 1
    %p113 = scmp.ne.s32.totalorder %s108, %s110
    %p114 = scmp.eq.s32.totalorder %s11, 0
    %p115 = por %p113, %p114
    %p116 = scmp.ne.s32.totalorder %s108, %s110
    %p117 = scmp.eq.s32.totalorder %s16, 1
    %p118 = por %p116, %p117
    %p119 = scmp.ne.s32.totalorder %s110, %s111
    %p120 = scmp.eq.s32.totalorder %s16, 0
    %p121 = por %p119, %p120
    %p122 = scmp.ne.s32.totalorder %s110, %s111
    %p123 = scmp.eq.s32.totalorder %s17, 1
    %p124 = por %p122, %p123
    %p126 = scmp.ne.s32.totalorder %s111, %s125
    %p127 = scmp.eq.s32.totalorder %s17, 0
    %p128 = por %p126, %p127
    %s129 = ssub.s32 %s11, %s18
    %p130 = scmp.eq.s32.totalorder %s129, 0
    %s132 = sadd.s32 %s131, 1
    %s133 = scalar_select %p130, %s131, %s132
    %p136 = pneg %p130
    %p137 = scmp.eq.s32.totalorder %s11, 1
    %p138 = por %p136, %p137
    %p139 = scmp.ne.s32.totalorder %s131, %s134
    %p140 = scmp.eq.s32.totalorder %s11, 0
    %p141 = por %p139, %p140
    %p142 = scmp.ne.s32.totalorder %s131, %s134
    %p143 = scmp.eq.s32.totalorder %s16, 1
    %p144 = por %p142, %p143
    %p145 = scmp.ne.s32.totalorder %s134, %s135
    %p146 = scmp.eq.s32.totalorder %s16, 0
    %p147 = por %p145, %p146
    %p148 = scmp.ne.s32.totalorder %s134, %s135
    %p149 = scmp.eq.s32.totalorder %s17, 1
    %p150 = por %p148, %p149
    %p152 = scmp.ne.s32.totalorder %s135, %s151
    %p153 = scmp.eq.s32.totalorder %s17, 0
    %p154 = por %p152, %p153
    %p155 = scmp.le.s32.totalorder 1, %s11
    %p156 = scmp.lt.s32.totalorder %s11, 3
    %p157 = pnand %p155, %p156
    %p158 = pneg %p157
    // Predicated region
    $region9: #{_enc_mbconv_forward.1} parent=5 // pred_check
      _
    $region10: #{_enc_mbconv_forward.1} parent=5 // pred_check_branch
      %160 = sbr.rel (%p157) target = $region12
    $region11: #{_enc_mbconv_forward.1} parent=5 // pred_region
      %s161 = ssub.s32 %s11, 1
      // Predicated region
      $region13: #{_enc_mbconv_forward.1} parent=11 // pred_check
        %p162 = pneg %p58
      $region14: #{_enc_mbconv_forward.1} parent=11 // pred_check_branch
        %164 = sbr.rel (%p162) target = $region16
      $region15: #{_enc_mbconv_forward.1} parent=11 // pred_region
        _
      $region16: #{_enc_mbconv_forward.1} parent=11 // pred_fallthru
        _
      // Predicated region
      $region17: #{_enc_mbconv_forward.1} parent=11 // pred_check
        %p165 = pneg %p79
      $region18: #{_enc_mbconv_forward.1} parent=11 // pred_check_branch
        %167 = sbr.rel (%p165) target = $region20
      $region19: #{_enc_mbconv_forward.1} parent=11 // pred_region
        _
      $region20: #{_enc_mbconv_forward.1} parent=11 // pred_fallthru
        _
      // Predicated region
      $region21: #{_enc_mbconv_forward.1} parent=11 // pred_check
        %p168 = pneg %p100
      $region22: #{_enc_mbconv_forward.1} parent=11 // pred_check_branch
        %170 = sbr.rel (%p168) target = $region24
      $region23: #{_enc_mbconv_forward.1} parent=11 // pred_region
        _
      $region24: #{_enc_mbconv_forward.1} parent=11 // pred_fallthru
        _
      // Predicated region
      $region25: #{_enc_mbconv_forward.1} parent=11 // pred_check
        %p171 = pneg %p121
      $region26: #{_enc_mbconv_forward.1} parent=11 // pred_check_branch
        %173 = sbr.rel (%p171) target = $region28
      $region27: #{_enc_mbconv_forward.1} parent=11 // pred_region
        _
      $region28: #{_enc_mbconv_forward.1} parent=11 // pred_fallthru
        _
    $region12: #{_enc_mbconv_forward.1} parent=5 // pred_fallthru
      _
    %p174 = scmp.lt.s32.totalorder %s11, 2
    // Predicated region
    $region29: #{_enc_mbconv_forward.1} parent=5 // pred_check
      %p175 = pneg %p174
    $region30: #{_enc_mbconv_forward.1} parent=5 // pred_check_branch
      %177 = sbr.rel (%p175) target = $region32
    $region31: #{_enc_mbconv_forward.1} parent=5 // pred_region
      // Predicated region
      $region33: #{_enc_mbconv_forward.1} parent=31 // pred_check
        %p178 = pneg %p31
      $region34: #{_enc_mbconv_forward.1} parent=31 // pred_check_branch
        %180 = sbr.rel (%p178) target = $region36
      $region35: #{_enc_mbconv_forward.1} parent=31 // pred_region
        %p181 = scmp.lt.s32.totalorder %s11, 1
        %s182 = scalar_select %p181, %s11, 1
        %s183 = smul.addr %s182, 2
        %s184 = smul.addr %s183, 8
        %s185 = scalar_lea.vmem %s0, %s184
      $region36: #{_enc_mbconv_forward.1} parent=31 // pred_fallthru
        _
    $region32: #{_enc_mbconv_forward.1} parent=5 // pred_fallthru
      _
    %p186 = scmp.le.s32.totalorder 1, %s11
    %p187 = scmp.lt.s32.totalorder %s11, 3
    %p188 = pnand %p186, %p187
    %p189 = pneg %p188
    // Predicated region
    $region37: #{_enc_mbconv_forward.1} parent=5 // pred_check
      _
    $region38: #{_enc_mbconv_forward.1} parent=5 // pred_check_branch
      %191 = sbr.rel (%p188) target = $region40
    $region39: #{_enc_mbconv_forward.1} parent=5 // pred_region
      %s192 = ssub.s32 %s11, 1
      %p193 = scmp.lt.s32.totalorder %s16, 1
      %s194 = scalar_select %p193, %s16, 1
      %s195 = smul.addr %s194, 2
      %s196 = smul.addr %s195, 8
      %s197 = scalar_lea.vmem %s0, %s196
      %p198 = pneg %p37
      %p199 = pneg %p34
      %p200 = pneg %p58
      %p201 = pneg %p55
      %p202 = pneg %p79
      %p203 = pneg %p76
      %p204 = pneg %p100
      %p205 = pneg %p97
      %p206 = pneg %p121
      %p207 = pneg %p118
      %p208 = pneg %p147
      %p209 = pneg %p144
      %p210 = scmp.lt.s32.totalorder %s16, 1
      %s211 = scalar_select %p210, %s16, 1
      %s212 = smul.addr %s211, 2
      %s213 = smul.addr %s212, 8
      %s214 = scalar_lea.vmem %s5, %s213
      %p215 = scmp.lt.s32.totalorder %s16, 1
      %s216 = scalar_select %p215, %s16, 1
      %s217 = smul.addr %s216, 2
      %s218 = smul.addr %s217, 8
      %s219 = scalar_lea.vmem %s0, %s218
      %p220 = scmp.lt.s32.totalorder %s16, 1
      %s221 = scalar_select %p220, %s16, 1
      %s222 = smul.addr %s221, 2
      %s223 = smul.addr %s222, 8
      %s224 = scalar_lea.vmem %s5, %s223
      %v225 = vld [vmem:[%s219] sm:$0xff]
      %v226 = vld [vmem:[%s219 + $0x8] sm:$0xff]
      %v227 = vld [vmem:[%s3] sm:$0xff]
      %v228 = vmul.f32 %v225, %v225
      %v229 = vmul.f32 %v226, %v226
      %231 = vset.pattern.permute.xlu0 8
      %232 = vperm.xlu0 %231, %v227
      %v233 = vpop.permute.xlu0 %232
      %vm235 = vcmask 64512
      %v236 = vsel %vm235, %v227, 0
      %238 = vmatprep.subr.mxu0 0.0
      %239 = vmatpush1.msra.mxu0 0.0
      %240 = vmatprep.subr.mxu0 0.0
      %241 = vmatpush1.msra.mxu0 0.0
      %242 = vmatprep.subr.mxu0 0.0
      %243 = vmatpush1.msra.mxu0 0.0
      %244 = vmatprep.subr.mxu0 0.0
      %245 = vmatpush1.msra.mxu0 0.0
      %246 = vmatprep.subr.mxu0 0.0
      %247 = vmatpush1.msra.mxu0 0.0
      %248 = vmatprep.subr.mxu0 0.0
      %249 = vmatpush1.msra.mxu0 0.0
      %250 = vmatprep.subr.mxu0 0.0
      %251 = vmatpush1.msra.mxu0 0.0
      %252 = vmatprep.subr.mxu0 0.0
      %253 = vmatpush1.msra.mxu0 0.0
      %254 = vmatprep.subr.mxu0 0.0
      %255 = vmatpush1.msra.mxu0 0.0
      %256 = vmatprep.subr.mxu0 0.0
      %257 = vmatpush1.msra.mxu0 0.0
      %258 = vmatprep.subr.mxu0 0.0
      %259 = vmatpush1.msra.mxu0 0.0
      %260 = vmatprep.subr.mxu0 0.0
      %261 = vmatpush1.msra.mxu0 0.0
      %262 = vmatprep.subr.mxu0 0.0
      %263 = vmatpush1.msra.mxu0 0.0
      %264 = vmatprep.subr.mxu0 0.0
      %265 = vmatpush1.msra.mxu0 0.0
      %266 = vmatprep.subr.mxu0 0.0
      %267 = vmatpush1.msra.mxu0 0.0
      %v268 = vand.u32 %v229, 4294901760
      %269 = vmatprep.subr.mxu0 %v268
      %v270 = vand.u32 %v228, 4294901760
      %271 = vmatpush1.msra.mxu0 %v270
      %272 = vmatprep.subr.mxu0 0.0
      %273 = vmatpush2.msra.mxu0 0.0
      %274 = vmatprep.subr.mxu0 0.0
      %275 = vmatpush2.msra.mxu0 0.0
      %276 = vmatprep.subr.mxu0 0.0
      %277 = vmatpush2.msra.mxu0 0.0
      %278 = vmatprep.subr.mxu0 0.0
      %279 = vmatpush2.msra.mxu0 0.0
      %280 = vmatprep.subr.mxu0 0.0
      %281 = vmatpush2.msra.mxu0 0.0
      %282 = vmatprep.subr.mxu0 0.0
      %283 = vmatpush2.msra.mxu0 0.0
      %284 = vmatprep.subr.mxu0 0.0
      %285 = vmatpush2.msra.mxu0 0.0
      %286 = vmatprep.subr.mxu0 0.0
      %287 = vmatpush2.msra.mxu0 0.0
      %288 = vmatprep.subr.mxu0 0.0
      %289 = vmatpush2.msra.mxu0 0.0
      %290 = vmatprep.subr.mxu0 0.0
      %291 = vmatpush2.msra.mxu0 0.0
      %292 = vmatprep.subr.mxu0 0.0
      %293 = vmatpush2.msra.mxu0 0.0
      %294 = vmatprep.subr.mxu0 0.0
      %295 = vmatpush2.msra.mxu0 0.0
      %296 = vmatprep.subr.mxu0 0.0
      %297 = vmatpush2.msra.mxu0 0.0
      %298 = vmatprep.subr.mxu0 0.0
      %299 = vmatpush2.msra.mxu0 0.0
      %300 = vmatprep.subr.mxu0 0.0
      %301 = vmatpush2.msra.mxu0 0.0
      %302 = vmatprep.subr.mxu0 0.0
      %303 = vmatpush2.msra.mxu0 0.0
      %304 = vmatprep.mubr.f32.mxu0 0.0
      %v305 = vand.u32 %v236, 4294901760
      %v306 = vsub.f32 %v236, %v305
      %v307 = vand.u32 %v306, 4294901760
      %v308 = vsub.f32 %v306, %v307
      %v309 = vand.u32 %v308, 4294901760
      %310 = vmatmul.mubr.f32.gmra.mxu0 %v309
      %v311 = vpop.f32.mrf.mxu0
      %v312 = vadd.f32 %v233, %v311
      %v313 = vpop.f32.mrf.mxu0
      %v314 = vadd.f32 %v233, %v313
      %315 = vdwg.mxu0
      %316 = vmatprep.subr.mxu0 0.0
      %317 = vmatpush1.msra.mxu0 0.0
      %318 = vmatprep.subr.mxu0 0.0
      %319 = vmatpush1.msra.mxu0 0.0
      %320 = vmatprep.subr.mxu0 0.0
      %321 = vmatpush1.msra.mxu0 0.0
      %322 = vmatprep.subr.mxu0 0.0
      %323 = vmatpush1.msra.mxu0 0.0
      %324 = vmatprep.subr.mxu0 0.0
      %325 = vmatpush1.msra.mxu0 0.0
      %326 = vmatprep.subr.mxu0 0.0
      %327 = vmatpush1.msra.mxu0 0.0
      %328 = vmatprep.subr.mxu0 0.0
      %329 = vmatpush1.msra.mxu0 0.0
      %330 = vmatprep.subr.mxu0 0.0
      %331 = vmatpush1.msra.mxu0 0.0
      %332 = vmatprep.subr.mxu0 0.0
      %333 = vmatpush1.msra.mxu0 0.0
      %334 = vmatprep.subr.mxu0 0.0
      %335 = vmatpush1.msra.mxu0 0.0
      %336 = vmatprep.subr.mxu0 0.0
      %337 = vmatpush1.msra.mxu0 0.0
      %338 = vmatprep.subr.mxu0 0.0
      %339 = vmatpush1.msra.mxu0 0.0
      %340 = vmatprep.subr.mxu0 0.0
      %341 = vmatpush1.msra.mxu0 0.0
      %342 = vmatprep.subr.mxu0 0.0
      %343 = vmatpush1.msra.mxu0 0.0
      %344 = vmatprep.subr.mxu0 0.0
      %345 = vmatpush1.msra.mxu0 0.0
      %v346 = vand.u32 %v229, 4294901760
      %v347 = vsub.f32 %v229, %v346
      %v348 = vand.u32 %v347, 4294901760
      %v349 = vsub.f32 %v347, %v348
      %v350 = vand.u32 %v349, 4294901760
      %351 = vmatprep.subr.mxu0 %v350
      %v352 = vand.u32 %v228, 4294901760
      %v353 = vsub.f32 %v228, %v352
      %v354 = vand.u32 %v353, 4294901760
      %v355 = vsub.f32 %v353, %v354
      %v356 = vand.u32 %v355, 4294901760
      %357 = vmatpush1.msra.mxu0 %v356
      %358 = vmatprep.subr.mxu0 0.0
      %359 = vmatpush2.msra.mxu0 0.0
      %360 = vmatprep.subr.mxu0 0.0
      %361 = vmatpush2.msra.mxu0 0.0
      %362 = vmatprep.subr.mxu0 0.0
      %363 = vmatpush2.msra.mxu0 0.0
      %364 = vmatprep.subr.mxu0 0.0
      %365 = vmatpush2.msra.mxu0 0.0
      %366 = vmatprep.subr.mxu0 0.0
      %367 = vmatpush2.msra.mxu0 0.0
      %368 = vmatprep.subr.mxu0 0.0
      %369 = vmatpush2.msra.mxu0 0.0
      %370 = vmatprep.subr.mxu0 0.0
      %371 = vmatpush2.msra.mxu0 0.0
      %372 = vmatprep.subr.mxu0 0.0
      %373 = vmatpush2.msra.mxu0 0.0
      %374 = vmatprep.subr.mxu0 0.0
      %375 = vmatpush2.msra.mxu0 0.0
      %376 = vmatprep.subr.mxu0 0.0
      %377 = vmatpush2.msra.mxu0 0.0
      %378 = vmatprep.subr.mxu0 0.0
      %379 = vmatpush2.msra.mxu0 0.0
      %380 = vmatprep.subr.mxu0 0.0
      %381 = vmatpush2.msra.mxu0 0.0
      %382 = vmatprep.subr.mxu0 0.0
      %383 = vmatpush2.msra.mxu0 0.0
      %384 = vmatprep.subr.mxu0 0.0
      %385 = vmatpush2.msra.mxu0 0.0
      %386 = vmatprep.subr.mxu0 0.0
      %387 = vmatpush2.msra.mxu0 0.0
      %388 = vmatprep.subr.mxu0 0.0
      %389 = vmatpush2.msra.mxu0 0.0
      %390 = vmatprep.mubr.f32.mxu0 0.0
      %v391 = vand.u32 %v236, 4294901760
      %392 = vmatmul.mubr.f32.gmra.mxu0 %v391
      %v393 = vpop.f32.mrf.mxu0
      %v394 = vadd.f32 %v312, %v393
      %v395 = vpop.f32.mrf.mxu0
      %v396 = vadd.f32 %v314, %v395
      %397 = vdwg.mxu0
      %398 = vmatprep.subr.mxu0 0.0
      %399 = vmatpush1.msra.mxu0 0.0
      %400 = vmatprep.subr.mxu0 0.0
      %401 = vmatpush1.msra.mxu0 0.0
      %402 = vmatprep.subr.mxu0 0.0
      %403 = vmatpush1.msra.mxu0 0.0
      %404 = vmatprep.subr.mxu0 0.0
      %405 = vmatpush1.msra.mxu0 0.0
      %406 = vmatprep.subr.mxu0 0.0
      %407 = vmatpush1.msra.mxu0 0.0
      %408 = vmatprep.subr.mxu0 0.0
      %409 = vmatpush1.msra.mxu0 0.0
      %410 = vmatprep.subr.mxu0 0.0
      %411 = vmatpush1.msra.mxu0 0.0
      %412 = vmatprep.subr.mxu0 0.0
      %413 = vmatpush1.msra.mxu0 0.0
      %414 = vmatprep.subr.mxu0 0.0
      %415 = vmatpush1.msra.mxu0 0.0
      %416 = vmatprep.subr.mxu0 0.0
      %417 = vmatpush1.msra.mxu0 0.0
      %418 = vmatprep.subr.mxu0 0.0
      %419 = vmatpush1.msra.mxu0 0.0
      %420 = vmatprep.subr.mxu0 0.0
      %421 = vmatpush1.msra.mxu0 0.0
      %422 = vmatprep.subr.mxu0 0.0
      %423 = vmatpush1.msra.mxu0 0.0
      %424 = vmatprep.subr.mxu0 0.0
      %425 = vmatpush1.msra.mxu0 0.0
      %426 = vmatprep.subr.mxu0 0.0
      %427 = vmatpush1.msra.mxu0 0.0
      %v428 = vand.u32 %v229, 4294901760
      %v429 = vsub.f32 %v229, %v428
      %430 = vmatprep.subr.mxu0 %v429
      %v431 = vand.u32 %v228, 4294901760
      %v432 = vsub.f32 %v228, %v431
      %433 = vmatpush1.msra.mxu0 %v432
      %434 = vmatprep.subr.mxu0 0.0
      %435 = vmatpush2.msra.mxu0 0.0
      %436 = vmatprep.subr.mxu0 0.0
      %437 = vmatpush2.msra.mxu0 0.0
      %438 = vmatprep.subr.mxu0 0.0
      %439 = vmatpush2.msra.mxu0 0.0
      %440 = vmatprep.subr.mxu0 0.0
      %441 = vmatpush2.msra.mxu0 0.0
      %442 = vmatprep.subr.mxu0 0.0
      %443 = vmatpush2.msra.mxu0 0.0
      %444 = vmatprep.subr.mxu0 0.0
      %445 = vmatpush2.msra.mxu0 0.0
      %446 = vmatprep.subr.mxu0 0.0
      %447 = vmatpush2.msra.mxu0 0.0
      %448 = vmatprep.subr.mxu0 0.0
      %449 = vmatpush2.msra.mxu0 0.0
      %450 = vmatprep.subr.mxu0 0.0
      %451 = vmatpush2.msra.mxu0 0.0
      %452 = vmatprep.subr.mxu0 0.0
      %453 = vmatpush2.msra.mxu0 0.0
      %454 = vmatprep.subr.mxu0 0.0
      %455 = vmatpush2.msra.mxu0 0.0
      %456 = vmatprep.subr.mxu0 0.0
      %457 = vmatpush2.msra.mxu0 0.0
      %458 = vmatprep.subr.mxu0 0.0
      %459 = vmatpush2.msra.mxu0 0.0
      %460 = vmatprep.subr.mxu0 0.0
      %461 = vmatpush2.msra.mxu0 0.0
      %462 = vmatprep.subr.mxu0 0.0
      %463 = vmatpush2.msra.mxu0 0.0
      %464 = vmatprep.subr.mxu0 0.0
      %465 = vmatpush2.msra.mxu0 0.0
      %466 = vmatprep.mubr.f32.mxu0 0.0
      %v467 = vand.u32 %v236, 4294901760
      %v468 = vsub.f32 %v236, %v467
      %469 = vmatmul.mubr.f32.gmra.mxu0 %v468
      %v470 = vpop.f32.mrf.mxu0
      %v471 = vadd.f32 %v394, %v470
      %v472 = vpop.f32.mrf.mxu0
      %v473 = vadd.f32 %v396, %v472
      %474 = vdwg.mxu0
      %475 = vmatprep.subr.mxu0 0.0
      %476 = vmatpush1.msra.mxu0 0.0
      %477 = vmatprep.subr.mxu0 0.0
      %478 = vmatpush1.msra.mxu0 0.0
      %479 = vmatprep.subr.mxu0 0.0
      %480 = vmatpush1.msra.mxu0 0.0
      %481 = vmatprep.subr.mxu0 0.0
      %482 = vmatpush1.msra.mxu0 0.0
      %483 = vmatprep.subr.mxu0 0.0
      %484 = vmatpush1.msra.mxu0 0.0
      %485 = vmatprep.subr.mxu0 0.0
      %486 = vmatpush1.msra.mxu0 0.0
      %487 = vmatprep.subr.mxu0 0.0
      %488 = vmatpush1.msra.mxu0 0.0
      %489 = vmatprep.subr.mxu0 0.0
      %490 = vmatpush1.msra.mxu0 0.0
      %491 = vmatprep.subr.mxu0 0.0
      %492 = vmatpush1.msra.mxu0 0.0
      %493 = vmatprep.subr.mxu0 0.0
      %494 = vmatpush1.msra.mxu0 0.0
      %495 = vmatprep.subr.mxu0 0.0
      %496 = vmatpush1.msra.mxu0 0.0
      %497 = vmatprep.subr.mxu0 0.0
      %498 = vmatpush1.msra.mxu0 0.0
      %499 = vmatprep.subr.mxu0 0.0
      %500 = vmatpush1.msra.mxu0 0.0
      %501 = vmatprep.subr.mxu0 0.0
      %502 = vmatpush1.msra.mxu0 0.0
      %503 = vmatprep.subr.mxu0 0.0
      %504 = vmatpush1.msra.mxu0 0.0
      %v505 = vand.u32 %v229, 4294901760
      %506 = vmatprep.subr.mxu0 %v505
      %v507 = vand.u32 %v228, 4294901760
      %508 = vmatpush1.msra.mxu0 %v507
      %509 = vmatprep.subr.mxu0 0.0
      %510 = vmatpush2.msra.mxu0 0.0
      %511 = vmatprep.subr.mxu0 0.0
      %512 = vmatpush2.msra.mxu0 0.0
      %513 = vmatprep.subr.mxu0 0.0
      %514 = vmatpush2.msra.mxu0 0.0
      %515 = vmatprep.subr.mxu0 0.0
      %516 = vmatpush2.msra.mxu0 0.0
      %517 = vmatprep.subr.mxu0 0.0
      %518 = vmatpush2.msra.mxu0 0.0
      %519 = vmatprep.subr.mxu0 0.0
      %520 = vmatpush2.msra.mxu0 0.0
      %521 = vmatprep.subr.mxu0 0.0
      %522 = vmatpush2.msra.mxu0 0.0
      %523 = vmatprep.subr.mxu0 0.0
      %524 = vmatpush2.msra.mxu0 0.0
      %525 = vmatprep.subr.mxu0 0.0
      %526 = vmatpush2.msra.mxu0 0.0
      %527 = vmatprep.subr.mxu0 0.0
      %528 = vmatpush2.msra.mxu0 0.0
      %529 = vmatprep.subr.mxu0 0.0
      %530 = vmatpush2.msra.mxu0 0.0
      %531 = vmatprep.subr.mxu0 0.0
      %532 = vmatpush2.msra.mxu0 0.0
      %533 = vmatprep.subr.mxu0 0.0
      %534 = vmatpush2.msra.mxu0 0.0
      %535 = vmatprep.subr.mxu0 0.0
      %536 = vmatpush2.msra.mxu0 0.0
      %537 = vmatprep.subr.mxu0 0.0
      %538 = vmatpush2.msra.mxu0 0.0
      %539 = vmatprep.subr.mxu0 0.0
      %540 = vmatpush2.msra.mxu0 0.0
      %541 = vmatprep.mubr.f32.mxu0 0.0
      %v542 = vand.u32 %v236, 4294901760
      %v543 = vsub.f32 %v236, %v542
      %v544 = vand.u32 %v543, 4294901760
      %545 = vmatmul.mubr.f32.gmra.mxu0 %v544
      %v546 = vpop.f32.mrf.mxu0
      %v547 = vadd.f32 %v471, %v546
      %v548 = vpop.f32.mrf.mxu0
      %v549 = vadd.f32 %v473, %v548
      %550 = vdwg.mxu0
      %551 = vmatprep.subr.mxu0 0.0
      %552 = vmatpush1.msra.mxu0 0.0
      %553 = vmatprep.subr.mxu0 0.0
      %554 = vmatpush1.msra.mxu0 0.0
      %555 = vmatprep.subr.mxu0 0.0
      %556 = vmatpush1.msra.mxu0 0.0
      %557 = vmatprep.subr.mxu0 0.0
      %558 = vmatpush1.msra.mxu0 0.0
      %559 = vmatprep.subr.mxu0 0.0
      %560 = vmatpush1.msra.mxu0 0.0
      %561 = vmatprep.subr.mxu0 0.0
      %562 = vmatpush1.msra.mxu0 0.0
      %563 = vmatprep.subr.mxu0 0.0
      %564 = vmatpush1.msra.mxu0 0.0
      %565 = vmatprep.subr.mxu0 0.0
      %566 = vmatpush1.msra.mxu0 0.0
      %567 = vmatprep.subr.mxu0 0.0
      %568 = vmatpush1.msra.mxu0 0.0
      %569 = vmatprep.subr.mxu0 0.0
      %570 = vmatpush1.msra.mxu0 0.0
      %571 = vmatprep.subr.mxu0 0.0
      %572 = vmatpush1.msra.mxu0 0.0
      %573 = vmatprep.subr.mxu0 0.0
      %574 = vmatpush1.msra.mxu0 0.0
      %575 = vmatprep.subr.mxu0 0.0
      %576 = vmatpush1.msra.mxu0 0.0
      %577 = vmatprep.subr.mxu0 0.0
      %578 = vmatpush1.msra.mxu0 0.0
      %579 = vmatprep.subr.mxu0 0.0
      %580 = vmatpush1.msra.mxu0 0.0
      %v581 = vand.u32 %v229, 4294901760
      %v582 = vsub.f32 %v229, %v581
      %v583 = vand.u32 %v582, 4294901760
      %584 = vmatprep.subr.mxu0 %v583
      %v585 = vand.u32 %v228, 4294901760
      %v586 = vsub.f32 %v228, %v585
      %v587 = vand.u32 %v586, 4294901760
      %588 = vmatpush1.msra.mxu0 %v587
      %589 = vmatprep.subr.mxu0 0.0
      %590 = vmatpush2.msra.mxu0 0.0
      %591 = vmatprep.subr.mxu0 0.0
      %592 = vmatpush2.msra.mxu0 0.0
      %593 = vmatprep.subr.mxu0 0.0
      %594 = vmatpush2.msra.mxu0 0.0
      %595 = vmatprep.subr.mxu0 0.0
      %596 = vmatpush2.msra.mxu0 0.0
      %597 = vmatprep.subr.mxu0 0.0
      %598 = vmatpush2.msra.mxu0 0.0
      %599 = vmatprep.subr.mxu0 0.0
      %600 = vmatpush2.msra.mxu0 0.0
      %601 = vmatprep.subr.mxu0 0.0
      %602 = vmatpush2.msra.mxu0 0.0
      %603 = vmatprep.subr.mxu0 0.0
      %604 = vmatpush2.msra.mxu0 0.0
      %605 = vmatprep.subr.mxu0 0.0
      %606 = vmatpush2.msra.mxu0 0.0
      %607 = vmatprep.subr.mxu0 0.0
      %608 = vmatpush2.msra.mxu0 0.0
      %609 = vmatprep.subr.mxu0 0.0
      %610 = vmatpush2.msra.mxu0 0.0
      %611 = vmatprep.subr.mxu0 0.0
      %612 = vmatpush2.msra.mxu0 0.0
      %613 = vmatprep.subr.mxu0 0.0
      %614 = vmatpush2.msra.mxu0 0.0
      %615 = vmatprep.subr.mxu0 0.0
      %616 = vmatpush2.msra.mxu0 0.0
      %617 = vmatprep.subr.mxu0 0.0
      %618 = vmatpush2.msra.mxu0 0.0
      %619 = vmatprep.subr.mxu0 0.0
      %620 = vmatpush2.msra.mxu0 0.0
      %621 = vmatprep.mubr.f32.mxu0 0.0
      %v622 = vand.u32 %v236, 4294901760
      %623 = vmatmul.mubr.f32.gmra.mxu0 %v622
      %v624 = vpop.f32.mrf.mxu0
      %v625 = vadd.f32 %v547, %v624
      %v626 = vpop.f32.mrf.mxu0
      %v627 = vadd.f32 %v549, %v626
      %628 = vdwg.mxu0
      %629 = vmatprep.subr.mxu0 0.0
      %630 = vmatpush1.msra.mxu0 0.0
      %631 = vmatprep.subr.mxu0 0.0
      %632 = vmatpush1.msra.mxu0 0.0
      %633 = vmatprep.subr.mxu0 0.0
      %634 = vmatpush1.msra.mxu0 0.0
      %635 = vmatprep.subr.mxu0 0.0
      %636 = vmatpush1.msra.mxu0 0.0
      %637 = vmatprep.subr.mxu0 0.0
      %638 = vmatpush1.msra.mxu0 0.0
      %639 = vmatprep.subr.mxu0 0.0
      %640 = vmatpush1.msra.mxu0 0.0
      %641 = vmatprep.subr.mxu0 0.0
      %642 = vmatpush1.msra.mxu0 0.0
      %643 = vmatprep.subr.mxu0 0.0
      %644 = vmatpush1.msra.mxu0 0.0
      %645 = vmatprep.subr.mxu0 0.0
      %646 = vmatpush1.msra.mxu0 0.0
      %647 = vmatprep.subr.mxu0 0.0
      %648 = vmatpush1.msra.mxu0 0.0
      %649 = vmatprep.subr.mxu0 0.0
      %650 = vmatpush1.msra.mxu0 0.0
      %651 = vmatprep.subr.mxu0 0.0
      %652 = vmatpush1.msra.mxu0 0.0
      %653 = vmatprep.subr.mxu0 0.0
      %654 = vmatpush1.msra.mxu0 0.0
      %655 = vmatprep.subr.mxu0 0.0
      %656 = vmatpush1.msra.mxu0 0.0
      %657 = vmatprep.subr.mxu0 0.0
      %658 = vmatpush1.msra.mxu0 0.0
      %v659 = vand.u32 %v229, 4294901760
      %660 = vmatprep.subr.mxu0 %v659
      %v661 = vand.u32 %v228, 4294901760
      %662 = vmatpush1.msra.mxu0 %v661
      %663 = vmatprep.subr.mxu0 0.0
      %664 = vmatpush2.msra.mxu0 0.0
      %665 = vmatprep.subr.mxu0 0.0
      %666 = vmatpush2.msra.mxu0 0.0
      %667 = vmatprep.subr.mxu0 0.0
      %668 = vmatpush2.msra.mxu0 0.0
      %669 = vmatprep.subr.mxu0 0.0
      %670 = vmatpush2.msra.mxu0 0.0
      %671 = vmatprep.subr.mxu0 0.0
      %672 = vmatpush2.msra.mxu0 0.0
      %673 = vmatprep.subr.mxu0 0.0
      %674 = vmatpush2.msra.mxu0 0.0
      %675 = vmatprep.subr.mxu0 0.0
      %676 = vmatpush2.msra.mxu0 0.0
      %677 = vmatprep.subr.mxu0 0.0
      %678 = vmatpush2.msra.mxu0 0.0
      %679 = vmatprep.subr.mxu0 0.0
      %680 = vmatpush2.msra.mxu0 0.0
      %681 = vmatprep.subr.mxu0 0.0
      %682 = vmatpush2.msra.mxu0 0.0
      %683 = vmatprep.subr.mxu0 0.0
      %684 = vmatpush2.msra.mxu0 0.0
      %685 = vmatprep.subr.mxu0 0.0
      %686 = vmatpush2.msra.mxu0 0.0
      %687 = vmatprep.subr.mxu0 0.0
      %688 = vmatpush2.msra.mxu0 0.0
      %689 = vmatprep.subr.mxu0 0.0
      %690 = vmatpush2.msra.mxu0 0.0
      %691 = vmatprep.subr.mxu0 0.0
      %692 = vmatpush2.msra.mxu0 0.0
      %693 = vmatprep.subr.mxu0 0.0
      %694 = vmatpush2.msra.mxu0 0.0
      %695 = vmatprep.mubr.f32.mxu0 0.0
      %v696 = vand.u32 %v236, 4294901760
      %697 = vmatmul.mubr.f32.gmra.mxu0 %v696
      %v698 = vpop.f32.mrf.mxu0
      %v699 = vadd.f32 %v625, %v698
      %v700 = vpop.f32.mrf.mxu0
      %v701 = vadd.f32 %v627, %v700
      %702 = vdwg.mxu0
      %v703 = vrsqrt.pop %v699
      %v704 = vrsqrt.pop %v701
      %v705 = vmul.f32 %v225, %v703
      %v706 = vmul.f32 %v226, %v704
      %v707 = vld [vmem:[%s2] sm:$0xff]
      %v708 = vld [vmem:[%s2 + $0x8] sm:$0xff]
      %v709 = vld [vmem:[%s2 + $0x10] sm:$0xff]
      %v710 = vld [vmem:[%s2 + $0x18] sm:$0xff]
      %712 = vset.pattern.permute.xlu0 23
      %713 = vperm.xlu0 %712, %v707
      %v714 = vpop.permute.xlu0 %713
      %717 = vset.pattern.permute.xlu0 23
      %718 = vperm.xlu0 %717, %v708
      %v719 = vpop.permute.xlu0 %718
      %722 = vset.pattern.permute.xlu0 23
      %723 = vperm.xlu0 %722, %v709
      %v724 = vpop.permute.xlu0 %723
      %727 = vset.pattern.permute.xlu0 23
      %728 = vperm.xlu0 %727, %v710
      %v729 = vpop.permute.xlu0 %728
      %v731 = vsel %vm235, %v707, 0
      %v733 = vsel %vm235, %v708, 0
      %v735 = vsel %vm235, %v709, 0
      %v737 = vsel %vm235, %v710, 0
      %739 = vmatprep.subr.mxu0 0.0
      %740 = vmatpush1.msra.mxu0 0.0
      %741 = vmatprep.subr.mxu0 0.0
      %742 = vmatpush1.msra.mxu0 0.0
      %743 = vmatprep.subr.mxu0 0.0
      %744 = vmatpush1.msra.mxu0 0.0
      %745 = vmatprep.subr.mxu0 0.0
      %746 = vmatpush1.msra.mxu0 0.0
      %747 = vmatprep.subr.mxu0 0.0
      %748 = vmatpush1.msra.mxu0 0.0
      %749 = vmatprep.subr.mxu0 0.0
      %750 = vmatpush1.msra.mxu0 0.0
      %751 = vmatprep.subr.mxu0 0.0
      %752 = vmatpush1.msra.mxu0 0.0
      %753 = vmatprep.subr.mxu0 0.0
      %754 = vmatpush1.msra.mxu0 0.0
      %755 = vmatprep.subr.mxu0 0.0
      %756 = vmatpush1.msra.mxu0 0.0
      %757 = vmatprep.subr.mxu0 0.0
      %758 = vmatpush1.msra.mxu0 0.0
      %759 = vmatprep.subr.mxu0 0.0
      %760 = vmatpush1.msra.mxu0 0.0
      %761 = vmatprep.subr.mxu0 0.0
      %762 = vmatpush1.msra.mxu0 0.0
      %763 = vmatprep.subr.mxu0 0.0
      %764 = vmatpush1.msra.mxu0 0.0
      %765 = vmatprep.subr.mxu0 0.0
      %766 = vmatpush1.msra.mxu0 0.0
      %767 = vmatprep.subr.mxu0 0.0
      %768 = vmatpush1.msra.mxu0 0.0
      %v769 = vand.u32 %v706, 4294901760
      %770 = vmatprep.subr.mxu0 %v769
      %v771 = vand.u32 %v705, 4294901760
      %772 = vmatpush1.msra.mxu0 %v771
      %773 = vmatprep.subr.mxu0 0.0
      %774 = vmatpush2.msra.mxu0 0.0
      %775 = vmatprep.subr.mxu0 0.0
      %776 = vmatpush2.msra.mxu0 0.0
      %777 = vmatprep.subr.mxu0 0.0
      %778 = vmatpush2.msra.mxu0 0.0
      %779 = vmatprep.subr.mxu0 0.0
      %780 = vmatpush2.msra.mxu0 0.0
      %781 = vmatprep.subr.mxu0 0.0
      %782 = vmatpush2.msra.mxu0 0.0
      %783 = vmatprep.subr.mxu0 0.0
      %784 = vmatpush2.msra.mxu0 0.0
      %785 = vmatprep.subr.mxu0 0.0
      %786 = vmatpush2.msra.mxu0 0.0
      %787 = vmatprep.subr.mxu0 0.0
      %788 = vmatpush2.msra.mxu0 0.0
      %789 = vmatprep.subr.mxu0 0.0
      %790 = vmatpush2.msra.mxu0 0.0
      %791 = vmatprep.subr.mxu0 0.0
      %792 = vmatpush2.msra.mxu0 0.0
      %793 = vmatprep.subr.mxu0 0.0
      %794 = vmatpush2.msra.mxu0 0.0
      %795 = vmatprep.subr.mxu0 0.0
      %796 = vmatpush2.msra.mxu0 0.0
      %797 = vmatprep.subr.mxu0 0.0
      %798 = vmatpush2.msra.mxu0 0.0
      %799 = vmatprep.subr.mxu0 0.0
      %800 = vmatpush2.msra.mxu0 0.0
      %801 = vmatprep.subr.mxu0 0.0
      %802 = vmatpush2.msra.mxu0 0.0
      %803 = vmatprep.subr.mxu0 0.0
      %804 = vmatpush2.msra.mxu0 0.0
      %805 = vmatprep.mubr.f32.mxu0 0.0
      %v806 = vand.u32 %v731, 4294901760
      %v807 = vsub.f32 %v731, %v806
      %v808 = vand.u32 %v807, 4294901760
      %v809 = vsub.f32 %v807, %v808
      %v810 = vand.u32 %v809, 4294901760
      %811 = vmatmul.mubr.f32.gmra.mxu0 %v810
      %v812 = vpop.f32.mrf.mxu0
      %v813 = vadd.f32 %v714, %v812
      %v814 = vpop.f32.mrf.mxu0
      %v815 = vadd.f32 %v714, %v814
      %816 = vmatprep.mubr.f32.mxu0 0.0
      %v817 = vand.u32 %v733, 4294901760
      %v818 = vsub.f32 %v733, %v817
      %v819 = vand.u32 %v818, 4294901760
      %v820 = vsub.f32 %v818, %v819
      %v821 = vand.u32 %v820, 4294901760
      %822 = vmatmul.mubr.f32.gmra.mxu0 %v821
      %v823 = vpop.f32.mrf.mxu0
      %v824 = vadd.f32 %v719, %v823
      %v825 = vpop.f32.mrf.mxu0
      %v826 = vadd.f32 %v719, %v825
      %827 = vmatprep.mubr.f32.mxu0 0.0
      %v828 = vand.u32 %v735, 4294901760
      %v829 = vsub.f32 %v735, %v828
      %v830 = vand.u32 %v829, 4294901760
      %v831 = vsub.f32 %v829, %v830
      %v832 = vand.u32 %v831, 4294901760
      %833 = vmatmul.mubr.f32.gmra.mxu0 %v832
      %v834 = vpop.f32.mrf.mxu0
      %v835 = vadd.f32 %v724, %v834
      %v836 = vpop.f32.mrf.mxu0
      %v837 = vadd.f32 %v724, %v836
      %838 = vmatprep.mubr.f32.mxu0 0.0
      %v839 = vand.u32 %v737, 4294901760
      %v840 = vsub.f32 %v737, %v839
      %v841 = vand.u32 %v840, 4294901760
      %v842 = vsub.f32 %v840, %v841
      %v843 = vand.u32 %v842, 4294901760
      %844 = vmatmul.mubr.f32.gmra.mxu0 %v843
      %v845 = vpop.f32.mrf.mxu0
      %v846 = vadd.f32 %v729, %v845
      %v847 = vpop.f32.mrf.mxu0
      %v848 = vadd.f32 %v729, %v847
      %849 = vdwg.mxu0
      %850 = vmatprep.subr.mxu0 0.0
      %851 = vmatpush1.msra.mxu0 0.0
      %852 = vmatprep.subr.mxu0 0.0
      %853 = vmatpush1.msra.mxu0 0.0
      %854 = vmatprep.subr.mxu0 0.0
      %855 = vmatpush1.msra.mxu0 0.0
      %856 = vmatprep.subr.mxu0 0.0
      %857 = vmatpush1.msra.mxu0 0.0
      %858 = vmatprep.subr.mxu0 0.0
      %859 = vmatpush1.msra.mxu0 0.0
      %860 = vmatprep.subr.mxu0 0.0
      %861 = vmatpush1.msra.mxu0 0.0
      %862 = vmatprep.subr.mxu0 0.0
      %863 = vmatpush1.msra.mxu0 0.0
      %864 = vmatprep.subr.mxu0 0.0
      %865 = vmatpush1.msra.mxu0 0.0
      %866 = vmatprep.subr.mxu0 0.0
      %867 = vmatpush1.msra.mxu0 0.0
      %868 = vmatprep.subr.mxu0 0.0
      %869 = vmatpush1.msra.mxu0 0.0
      %870 = vmatprep.subr.mxu0 0.0
      %871 = vmatpush1.msra.mxu0 0.0
      %872 = vmatprep.subr.mxu0 0.0
      %873 = vmatpush1.msra.mxu0 0.0
      %874 = vmatprep.subr.mxu0 0.0
      %875 = vmatpush1.msra.mxu0 0.0
      %876 = vmatprep.subr.mxu0 0.0
      %877 = vmatpush1.msra.mxu0 0.0
      %878 = vmatprep.subr.mxu0 0.0
      %879 = vmatpush1.msra.mxu0 0.0
      %v880 = vand.u32 %v706, 4294901760
      %v881 = vsub.f32 %v706, %v880
      %v882 = vand.u32 %v881, 4294901760
      %v883 = vsub.f32 %v881, %v882
      %v884 = vand.u32 %v883, 4294901760
      %885 = vmatprep.subr.mxu0 %v884
      %v886 = vand.u32 %v705, 4294901760
      %v887 = vsub.f32 %v705, %v886
      %v888 = vand.u32 %v887, 4294901760
      %v889 = vsub.f32 %v887, %v888
      %v890 = vand.u32 %v889, 4294901760
      %891 = vmatpush1.msra.mxu0 %v890
      %892 = vmatprep.subr.mxu0 0.0
      %893 = vmatpush2.msra.mxu0 0.0
      %894 = vmatprep.subr.mxu0 0.0
      %895 = vmatpush2.msra.mxu0 0.0
      %896 = vmatprep.subr.mxu0 0.0
      %897 = vmatpush2.msra.mxu0 0.0
      %898 = vmatprep.subr.mxu0 0.0
      %899 = vmatpush2.msra.mxu0 0.0
      %900 = vmatprep.subr.mxu0 0.0
      %901 = vmatpush2.msra.mxu0 0.0
      %902 = vmatprep.subr.mxu0 0.0
      %903 = vmatpush2.msra.mxu0 0.0
      %904 = vmatprep.subr.mxu0 0.0
      %905 = vmatpush2.msra.mxu0 0.0
      %906 = vmatprep.subr.mxu0 0.0
      %907 = vmatpush2.msra.mxu0 0.0
      %908 = vmatprep.subr.mxu0 0.0
      %909 = vmatpush2.msra.mxu0 0.0
      %910 = vmatprep.subr.mxu0 0.0
      %911 = vmatpush2.msra.mxu0 0.0
      %912 = vmatprep.subr.mxu0 0.0
      %913 = vmatpush2.msra.mxu0 0.0
      %914 = vmatprep.subr.mxu0 0.0
      %915 = vmatpush2.msra.mxu0 0.0
      %916 = vmatprep.subr.mxu0 0.0
      %917 = vmatpush2.msra.mxu0 0.0
      %918 = vmatprep.subr.mxu0 0.0
      %919 = vmatpush2.msra.mxu0 0.0
      %920 = vmatprep.subr.mxu0 0.0
      %921 = vmatpush2.msra.mxu0 0.0
      %922 = vmatprep.subr.mxu0 0.0
      %923 = vmatpush2.msra.mxu0 0.0
      %924 = vmatprep.mubr.f32.mxu0 0.0
      %v925 = vand.u32 %v731, 4294901760
      %926 = vmatmul.mubr.f32.gmra.mxu0 %v925
      %v927 = vpop.f32.mrf.mxu0
      %v928 = vadd.f32 %v813, %v927
      %v929 = vpop.f32.mrf.mxu0
      %v930 = vadd.f32 %v815, %v929
      %931 = vmatprep.mubr.f32.mxu0 0.0
      %v932 = vand.u32 %v733, 4294901760
      %933 = vmatmul.mubr.f32.gmra.mxu0 %v932
      %v934 = vpop.f32.mrf.mxu0
      %v935 = vadd.f32 %v824, %v934
      %v936 = vpop.f32.mrf.mxu0
      %v937 = vadd.f32 %v826, %v936
      %938 = vmatprep.mubr.f32.mxu0 0.0
      %v939 = vand.u32 %v735, 4294901760
      %940 = vmatmul.mubr.f32.gmra.mxu0 %v939
      %v941 = vpop.f32.mrf.mxu0
      %v942 = vadd.f32 %v835, %v941
      %v943 = vpop.f32.mrf.mxu0
      %v944 = vadd.f32 %v837, %v943
      %945 = vmatprep.mubr.f32.mxu0 0.0
      %v946 = vand.u32 %v737, 4294901760
      %947 = vmatmul.mubr.f32.gmra.mxu0 %v946
      %v948 = vpop.f32.mrf.mxu0
      %v949 = vadd.f32 %v846, %v948
      %v950 = vpop.f32.mrf.mxu0
      %v951 = vadd.f32 %v848, %v950
      %952 = vdwg.mxu0
      %953 = vmatprep.subr.mxu0 0.0
      %954 = vmatpush1.msra.mxu0 0.0
      %955 = vmatprep.subr.mxu0 0.0
      %956 = vmatpush1.msra.mxu0 0.0
      %957 = vmatprep.subr.mxu0 0.0
      %958 = vmatpush1.msra.mxu0 0.0
      %959 = vmatprep.subr.mxu0 0.0
      %960 = vmatpush1.msra.mxu0 0.0
      %961 = vmatprep.subr.mxu0 0.0
      %962 = vmatpush1.msra.mxu0 0.0
      %963 = vmatprep.subr.mxu0 0.0
      %964 = vmatpush1.msra.mxu0 0.0
      %965 = vmatprep.subr.mxu0 0.0
      %966 = vmatpush1.msra.mxu0 0.0
      %967 = vmatprep.subr.mxu0 0.0
      %968 = vmatpush1.msra.mxu0 0.0
      %969 = vmatprep.subr.mxu0 0.0
      %970 = vmatpush1.msra.mxu0 0.0
      %971 = vmatprep.subr.mxu0 0.0
      %972 = vmatpush1.msra.mxu0 0.0
      %973 = vmatprep.subr.mxu0 0.0
      %974 = vmatpush1.msra.mxu0 0.0
      %975 = vmatprep.subr.mxu0 0.0
      %976 = vmatpush1.msra.mxu0 0.0
      %977 = vmatprep.subr.mxu0 0.0
      %978 = vmatpush1.msra.mxu0 0.0
      %979 = vmatprep.subr.mxu0 0.0
      %980 = vmatpush1.msra.mxu0 0.0
      %981 = vmatprep.subr.mxu0 0.0
      %982 = vmatpush1.msra.mxu0 0.0
      %v983 = vand.u32 %v706, 4294901760
      %v984 = vsub.f32 %v706, %v983
      %985 = vmatprep.subr.mxu0 %v984
      %v986 = vand.u32 %v705, 4294901760
      %v987 = vsub.f32 %v705, %v986
      %988 = vmatpush1.msra.mxu0 %v987
      %989 = vmatprep.subr.mxu0 0.0
      %990 = vmatpush2.msra.mxu0 0.0
      %991 = vmatprep.subr.mxu0 0.0
      %992 = vmatpush2.msra.mxu0 0.0
      %993 = vmatprep.subr.mxu0 0.0
      %994 = vmatpush2.msra.mxu0 0.0
      %995 = vmatprep.subr.mxu0 0.0
      %996 = vmatpush2.msra.mxu0 0.0
      %997 = vmatprep.subr.mxu0 0.0
      %998 = vmatpush2.msra.mxu0 0.0
      %999 = vmatprep.subr.mxu0 0.0
      %1000 = vmatpush2.msra.mxu0 0.0
      %1001 = vmatprep.subr.mxu0 0.0
      %1002 = vmatpush2.msra.mxu0 0.0
      %1003 = vmatprep.subr.mxu0 0.0
      %1004 = vmatpush2.msra.mxu0 0.0
      %1005 = vmatprep.subr.mxu0 0.0
      %1006 = vmatpush2.msra.mxu0 0.0
      %1007 = vmatprep.subr.mxu0 0.0
      %1008 = vmatpush2.msra.mxu0 0.0
      %1009 = vmatprep.subr.mxu0 0.0
      %1010 = vmatpush2.msra.mxu0 0.0
      %1011 = vmatprep.subr.mxu0 0.0
      %1012 = vmatpush2.msra.mxu0 0.0
      %1013 = vmatprep.subr.mxu0 0.0
      %1014 = vmatpush2.msra.mxu0 0.0
      %1015 = vmatprep.subr.mxu0 0.0
      %1016 = vmatpush2.msra.mxu0 0.0
      %1017 = vmatprep.subr.mxu0 0.0
      %1018 = vmatpush2.msra.mxu0 0.0
      %1019 = vmatprep.subr.mxu0 0.0
      %1020 = vmatpush2.msra.mxu0 0.0
      %1021 = vmatprep.mubr.f32.mxu0 0.0
      %v1022 = vand.u32 %v731, 4294901760
      %v1023 = vsub.f32 %v731, %v1022
      %1024 = vmatmul.mubr.f32.gmra.mxu0 %v1023
      %v1025 = vpop.f32.mrf.mxu0
      %v1026 = vadd.f32 %v928, %v1025
      %v1027 = vpop.f32.mrf.mxu0
      %v1028 = vadd.f32 %v930, %v1027
      %1029 = vmatprep.mubr.f32.mxu0 0.0
      %v1030 = vand.u32 %v733, 4294901760
      %v1031 = vsub.f32 %v733, %v1030
      %1032 = vmatmul.mubr.f32.gmra.mxu0 %v1031
      %v1033 = vpop.f32.mrf.mxu0
      %v1034 = vadd.f32 %v935, %v1033
      %v1035 = vpop.f32.mrf.mxu0
      %v1036 = vadd.f32 %v937, %v1035
      %1037 = vmatprep.mubr.f32.mxu0 0.0
      %v1038 = vand.u32 %v735, 4294901760
      %v1039 = vsub.f32 %v735, %v1038
      %1040 = vmatmul.mubr.f32.gmra.mxu0 %v1039
      %v1041 = vpop.f32.mrf.mxu0
      %v1042 = vadd.f32 %v942, %v1041
      %v1043 = vpop.f32.mrf.mxu0
      %v1044 = vadd.f32 %v944, %v1043
      %1045 = vmatprep.mubr.f32.mxu0 0.0
      %v1046 = vand.u32 %v737, 4294901760
      %v1047 = vsub.f32 %v737, %v1046
      %1048 = vmatmul.mubr.f32.gmra.mxu0 %v1047
      %v1049 = vpop.f32.mrf.mxu0
      %v1050 = vadd.f32 %v949, %v1049
      %v1051 = vpop.f32.mrf.mxu0
      %v1052 = vadd.f32 %v951, %v1051
      %1053 = vdwg.mxu0
      %1054 = vmatprep.subr.mxu0 0.0
      %1055 = vmatpush1.msra.mxu0 0.0
      %1056 = vmatprep.subr.mxu0 0.0
      %1057 = vmatpush1.msra.mxu0 0.0
      %1058 = vmatprep.subr.mxu0 0.0
      %1059 = vmatpush1.msra.mxu0 0.0
      %1060 = vmatprep.subr.mxu0 0.0
      %1061 = vmatpush1.msra.mxu0 0.0
      %1062 = vmatprep.subr.mxu0 0.0
      %1063 = vmatpush1.msra.mxu0 0.0
      %1064 = vmatprep.subr.mxu0 0.0
      %1065 = vmatpush1.msra.mxu0 0.0
      %1066 = vmatprep.subr.mxu0 0.0
      %1067 = vmatpush1.msra.mxu0 0.0
      %1068 = vmatprep.subr.mxu0 0.0
      %1069 = vmatpush1.msra.mxu0 0.0
      %1070 = vmatprep.subr.mxu0 0.0
      %1071 = vmatpush1.msra.mxu0 0.0
      %1072 = vmatprep.subr.mxu0 0.0
      %1073 = vmatpush1.msra.mxu0 0.0
      %1074 = vmatprep.subr.mxu0 0.0
      %1075 = vmatpush1.msra.mxu0 0.0
      %1076 = vmatprep.subr.mxu0 0.0
      %1077 = vmatpush1.msra.mxu0 0.0
      %1078 = vmatprep.subr.mxu0 0.0
      %1079 = vmatpush1.msra.mxu0 0.0
      %1080 = vmatprep.subr.mxu0 0.0
      %1081 = vmatpush1.msra.mxu0 0.0
      %1082 = vmatprep.subr.mxu0 0.0
      %1083 = vmatpush1.msra.mxu0 0.0
      %v1084 = vand.u32 %v706, 4294901760
      %1085 = vmatprep.subr.mxu0 %v1084
      %v1086 = vand.u32 %v705, 4294901760
      %1087 = vmatpush1.msra.mxu0 %v1086
      %1088 = vmatprep.subr.mxu0 0.0
      %1089 = vmatpush2.msra.mxu0 0.0
      %1090 = vmatprep.subr.mxu0 0.0
      %1091 = vmatpush2.msra.mxu0 0.0
      %1092 = vmatprep.subr.mxu0 0.0
      %1093 = vmatpush2.msra.mxu0 0.0
      %1094 = vmatprep.subr.mxu0 0.0
      %1095 = vmatpush2.msra.mxu0 0.0
      %1096 = vmatprep.subr.mxu0 0.0
      %1097 = vmatpush2.msra.mxu0 0.0
      %1098 = vmatprep.subr.mxu0 0.0
      %1099 = vmatpush2.msra.mxu0 0.0
      %1100 = vmatprep.subr.mxu0 0.0
      %1101 = vmatpush2.msra.mxu0 0.0
      %1102 = vmatprep.subr.mxu0 0.0
      %1103 = vmatpush2.msra.mxu0 0.0
      %1104 = vmatprep.subr.mxu0 0.0
      %1105 = vmatpush2.msra.mxu0 0.0
      %1106 = vmatprep.subr.mxu0 0.0
      %1107 = vmatpush2.msra.mxu0 0.0
      %1108 = vmatprep.subr.mxu0 0.0
      %1109 = vmatpush2.msra.mxu0 0.0
      %1110 = vmatprep.subr.mxu0 0.0
      %1111 = vmatpush2.msra.mxu0 0.0
      %1112 = vmatprep.subr.mxu0 0.0
      %1113 = vmatpush2.msra.mxu0 0.0
      %1114 = vmatprep.subr.mxu0 0.0
      %1115 = vmatpush2.msra.mxu0 0.0
      %1116 = vmatprep.subr.mxu0 0.0
      %1117 = vmatpush2.msra.mxu0 0.0
      %1118 = vmatprep.subr.mxu0 0.0
      %1119 = vmatpush2.msra.mxu0 0.0
      %1120 = vmatprep.mubr.f32.mxu0 0.0
      %v1121 = vand.u32 %v731, 4294901760
      %v1122 = vsub.f32 %v731, %v1121
      %v1123 = vand.u32 %v1122, 4294901760
      %1124 = vmatmul.mubr.f32.gmra.mxu0 %v1123
      %v1125 = vpop.f32.mrf.mxu0
      %v1126 = vadd.f32 %v1026, %v1125
      %v1127 = vpop.f32.mrf.mxu0
      %v1128 = vadd.f32 %v1028, %v1127
      %1129 = vmatprep.mubr.f32.mxu0 0.0
      %v1130 = vand.u32 %v733, 4294901760
      %v1131 = vsub.f32 %v733, %v1130
      %v1132 = vand.u32 %v1131, 4294901760
      %1133 = vmatmul.mubr.f32.gmra.mxu0 %v1132
      %v1134 = vpop.f32.mrf.mxu0
      %v1135 = vadd.f32 %v1034, %v1134
      %v1136 = vpop.f32.mrf.mxu0
      %v1137 = vadd.f32 %v1036, %v1136
      %1138 = vmatprep.mubr.f32.mxu0 0.0
      %v1139 = vand.u32 %v735, 4294901760
      %v1140 = vsub.f32 %v735, %v1139
      %v1141 = vand.u32 %v1140, 4294901760
      %1142 = vmatmul.mubr.f32.gmra.mxu0 %v1141
      %v1143 = vpop.f32.mrf.mxu0
      %v1144 = vadd.f32 %v1042, %v1143
      %v1145 = vpop.f32.mrf.mxu0
      %v1146 = vadd.f32 %v1044, %v1145
      %1147 = vmatprep.mubr.f32.mxu0 0.0
      %v1148 = vand.u32 %v737, 4294901760
      %v1149 = vsub.f32 %v737, %v1148
      %v1150 = vand.u32 %v1149, 4294901760
      %1151 = vmatmul.mubr.f32.gmra.mxu0 %v1150
      %v1152 = vpop.f32.mrf.mxu0
      %v1153 = vadd.f32 %v1050, %v1152
      %v1154 = vpop.f32.mrf.mxu0
      %v1155 = vadd.f32 %v1052, %v1154
      %1156 = vdwg.mxu0
      %1157 = vmatprep.subr.mxu0 0.0
      %1158 = vmatpush1.msra.mxu0 0.0
      %1159 = vmatprep.subr.mxu0 0.0
      %1160 = vmatpush1.msra.mxu0 0.0
      %1161 = vmatprep.subr.mxu0 0.0
      %1162 = vmatpush1.msra.mxu0 0.0
      %1163 = vmatprep.subr.mxu0 0.0
      %1164 = vmatpush1.msra.mxu0 0.0
      %1165 = vmatprep.subr.mxu0 0.0
      %1166 = vmatpush1.msra.mxu0 0.0
      %1167 = vmatprep.subr.mxu0 0.0
      %1168 = vmatpush1.msra.mxu0 0.0
      %1169 = vmatprep.subr.mxu0 0.0
      %1170 = vmatpush1.msra.mxu0 0.0
      %1171 = vmatprep.subr.mxu0 0.0
      %1172 = vmatpush1.msra.mxu0 0.0
      %1173 = vmatprep.subr.mxu0 0.0
      %1174 = vmatpush1.msra.mxu0 0.0
      %1175 = vmatprep.subr.mxu0 0.0
      %1176 = vmatpush1.msra.mxu0 0.0
      %1177 = vmatprep.subr.mxu0 0.0
      %1178 = vmatpush1.msra.mxu0 0.0
      %1179 = vmatprep.subr.mxu0 0.0
      %1180 = vmatpush1.msra.mxu0 0.0
      %1181 = vmatprep.subr.mxu0 0.0
      %1182 = vmatpush1.msra.mxu0 0.0
      %1183 = vmatprep.subr.mxu0 0.0
      %1184 = vmatpush1.msra.mxu0 0.0
      %1185 = vmatprep.subr.mxu0 0.0
      %1186 = vmatpush1.msra.mxu0 0.0
      %v1187 = vand.u32 %v706, 4294901760
      %v1188 = vsub.f32 %v706, %v1187
      %v1189 = vand.u32 %v1188, 4294901760
      %1190 = vmatprep.subr.mxu0 %v1189
      %v1191 = vand.u32 %v705, 4294901760
      %v1192 = vsub.f32 %v705, %v1191
      %v1193 = vand.u32 %v1192, 4294901760
      %1194 = vmatpush1.msra.mxu0 %v1193
      %1195 = vmatprep.subr.mxu0 0.0
      %1196 = vmatpush2.msra.mxu0 0.0
      %1197 = vmatprep.subr.mxu0 0.0
      %1198 = vmatpush2.msra.mxu0 0.0
      %1199 = vmatprep.subr.mxu0 0.0
      %1200 = vmatpush2.msra.mxu0 0.0
      %1201 = vmatprep.subr.mxu0 0.0
      %1202 = vmatpush2.msra.mxu0 0.0
      %1203 = vmatprep.subr.mxu0 0.0
      %1204 = vmatpush2.msra.mxu0 0.0
      %1205 = vmatprep.subr.mxu0 0.0
      %1206 = vmatpush2.msra.mxu0 0.0
      %1207 = vmatprep.subr.mxu0 0.0
      %1208 = vmatpush2.msra.mxu0 0.0
      %1209 = vmatprep.subr.mxu0 0.0
      %1210 = vmatpush2.msra.mxu0 0.0
      %1211 = vmatprep.subr.mxu0 0.0
      %1212 = vmatpush2.msra.mxu0 0.0
      %1213 = vmatprep.subr.mxu0 0.0
      %1214 = vmatpush2.msra.mxu0 0.0
      %1215 = vmatprep.subr.mxu0 0.0
      %1216 = vmatpush2.msra.mxu0 0.0
      %1217 = vmatprep.subr.mxu0 0.0
      %1218 = vmatpush2.msra.mxu0 0.0
      %1219 = vmatprep.subr.mxu0 0.0
      %1220 = vmatpush2.msra.mxu0 0.0
      %1221 = vmatprep.subr.mxu0 0.0
      %1222 = vmatpush2.msra.mxu0 0.0
      %1223 = vmatprep.subr.mxu0 0.0
      %1224 = vmatpush2.msra.mxu0 0.0
      %1225 = vmatprep.subr.mxu0 0.0
      %1226 = vmatpush2.msra.mxu0 0.0
      %1227 = vmatprep.mubr.f32.mxu0 0.0
      %v1228 = vand.u32 %v731, 4294901760
      %1229 = vmatmul.mubr.f32.gmra.mxu0 %v1228
      %v1230 = vpop.f32.mrf.mxu0
      %v1231 = vadd.f32 %v1126, %v1230
      %v1232 = vpop.f32.mrf.mxu0
      %v1233 = vadd.f32 %v1128, %v1232
      %1234 = vmatprep.mubr.f32.mxu0 0.0
      %v1235 = vand.u32 %v733, 4294901760
      %1236 = vmatmul.mubr.f32.gmra.mxu0 %v1235
      %v1237 = vpop.f32.mrf.mxu0
      %v1238 = vadd.f32 %v1135, %v1237
      %v1239 = vpop.f32.mrf.mxu0
      %v1240 = vadd.f32 %v1137, %v1239
      %1241 = vmatprep.mubr.f32.mxu0 0.0
      %v1242 = vand.u32 %v735, 4294901760
      %1243 = vmatmul.mubr.f32.gmra.mxu0 %v1242
      %v1244 = vpop.f32.mrf.mxu0
      %v1245 = vadd.f32 %v1144, %v1244
      %v1246 = vpop.f32.mrf.mxu0
      %v1247 = vadd.f32 %v1146, %v1246
      %1248 = vmatprep.mubr.f32.mxu0 0.0
      %v1249 = vand.u32 %v737, 4294901760
      %1250 = vmatmul.mubr.f32.gmra.mxu0 %v1249
      %v1251 = vpop.f32.mrf.mxu0
      %v1252 = vadd.f32 %v1153, %v1251
      %v1253 = vpop.f32.mrf.mxu0
      %v1254 = vadd.f32 %v1155, %v1253
      %1255 = vdwg.mxu0
      %1256 = vmatprep.subr.mxu0 0.0
      %1257 = vmatpush1.msra.mxu0 0.0
      %1258 = vmatprep.subr.mxu0 0.0
      %1259 = vmatpush1.msra.mxu0 0.0
      %1260 = vmatprep.subr.mxu0 0.0
      %1261 = vmatpush1.msra.mxu0 0.0
      %1262 = vmatprep.subr.mxu0 0.0
      %1263 = vmatpush1.msra.mxu0 0.0
      %1264 = vmatprep.subr.mxu0 0.0
      %1265 = vmatpush1.msra.mxu0 0.0
      %1266 = vmatprep.subr.mxu0 0.0
      %1267 = vmatpush1.msra.mxu0 0.0
      %1268 = vmatprep.subr.mxu0 0.0
      %1269 = vmatpush1.msra.mxu0 0.0
      %1270 = vmatprep.subr.mxu0 0.0
      %1271 = vmatpush1.msra.mxu0 0.0
      %1272 = vmatprep.subr.mxu0 0.0
      %1273 = vmatpush1.msra.mxu0 0.0
      %1274 = vmatprep.subr.mxu0 0.0
      %1275 = vmatpush1.msra.mxu0 0.0
      %1276 = vmatprep.subr.mxu0 0.0
      %1277 = vmatpush1.msra.mxu0 0.0
      %1278 = vmatprep.subr.mxu0 0.0
      %1279 = vmatpush1.msra.mxu0 0.0
      %1280 = vmatprep.subr.mxu0 0.0
      %1281 = vmatpush1.msra.mxu0 0.0
      %1282 = vmatprep.subr.mxu0 0.0
      %1283 = vmatpush1.msra.mxu0 0.0
      %1284 = vmatprep.subr.mxu0 0.0
      %1285 = vmatpush1.msra.mxu0 0.0
      %v1286 = vand.u32 %v706, 4294901760
      %1287 = vmatprep.subr.mxu0 %v1286
      %v1288 = vand.u32 %v705, 4294901760
      %1289 = vmatpush1.msra.mxu0 %v1288
      %1290 = vmatprep.subr.mxu0 0.0
      %1291 = vmatpush2.msra.mxu0 0.0
      %1292 = vmatprep.subr.mxu0 0.0
      %1293 = vmatpush2.msra.mxu0 0.0
      %1294 = vmatprep.subr.mxu0 0.0
      %1295 = vmatpush2.msra.mxu0 0.0
      %1296 = vmatprep.subr.mxu0 0.0
      %1297 = vmatpush2.msra.mxu0 0.0
      %1298 = vmatprep.subr.mxu0 0.0
      %1299 = vmatpush2.msra.mxu0 0.0
      %1300 = vmatprep.subr.mxu0 0.0
      %1301 = vmatpush2.msra.mxu0 0.0
      %1302 = vmatprep.subr.mxu0 0.0
      %1303 = vmatpush2.msra.mxu0 0.0
      %1304 = vmatprep.subr.mxu0 0.0
      %1305 = vmatpush2.msra.mxu0 0.0
      %1306 = vmatprep.subr.mxu0 0.0
      %1307 = vmatpush2.msra.mxu0 0.0
      %1308 = vmatprep.subr.mxu0 0.0
      %1309 = vmatpush2.msra.mxu0 0.0
      %1310 = vmatprep.subr.mxu0 0.0
      %1311 = vmatpush2.msra.mxu0 0.0
      %1312 = vmatprep.subr.mxu0 0.0
      %1313 = vmatpush2.msra.mxu0 0.0
      %1314 = vmatprep.subr.mxu0 0.0
      %1315 = vmatpush2.msra.mxu0 0.0
      %1316 = vmatprep.subr.mxu0 0.0
      %1317 = vmatpush2.msra.mxu0 0.0
      %1318 = vmatprep.subr.mxu0 0.0
      %1319 = vmatpush2.msra.mxu0 0.0
      %1320 = vmatprep.subr.mxu0 0.0
      %1321 = vmatpush2.msra.mxu0 0.0
      %1322 = vmatprep.mubr.f32.mxu0 0.0
      %v1323 = vand.u32 %v731, 4294901760
      %1324 = vmatmul.mubr.f32.gmra.mxu0 %v1323
      %v1325 = vpop.f32.mrf.mxu0
      %v1326 = vadd.f32 %v1231, %v1325
      %v1327 = vpop.f32.mrf.mxu0
      %v1328 = vadd.f32 %v1233, %v1327
      %1329 = vmatprep.mubr.f32.mxu0 0.0
      %v1330 = vand.u32 %v733, 4294901760
      %1331 = vmatmul.mubr.f32.gmra.mxu0 %v1330
      %v1332 = vpop.f32.mrf.mxu0
      %v1333 = vadd.f32 %v1238, %v1332
      %v1334 = vpop.f32.mrf.mxu0
      %v1335 = vadd.f32 %v1240, %v1334
      %1336 = vmatprep.mubr.f32.mxu0 0.0
      %v1337 = vand.u32 %v735, 4294901760
      %1338 = vmatmul.mubr.f32.gmra.mxu0 %v1337
      %v1339 = vpop.f32.mrf.mxu0
      %v1340 = vadd.f32 %v1245, %v1339
      %v1341 = vpop.f32.mrf.mxu0
      %v1342 = vadd.f32 %v1247, %v1341
      %1343 = vmatprep.mubr.f32.mxu0 0.0
      %v1344 = vand.u32 %v737, 4294901760
      %1345 = vmatmul.mubr.f32.gmra.mxu0 %v1344
      %v1346 = vpop.f32.mrf.mxu0
      %v1347 = vadd.f32 %v1252, %v1346
      %v1348 = vpop.f32.mrf.mxu0
      %v1349 = vadd.f32 %v1254, %v1348
      %1350 = vdwg.mxu0
      %v1351 = vxor.u32 %v1326, 2147483648
      %v1352 = vxor.u32 %v1328, 2147483648
      %v1353 = vxor.u32 %v1333, 2147483648
      %v1354 = vxor.u32 %v1335, 2147483648
      %v1355 = vxor.u32 %v1340, 2147483648
      %v1356 = vxor.u32 %v1342, 2147483648
      %v1357 = vxor.u32 %v1347, 2147483648
      %v1358 = vxor.u32 %v1349, 2147483648
      %v1359 = vmul.f32 %v1351, 1.442695
      %v1360 = vpow.pop %v1359
      %v1361 = vmul.f32 %v1352, 1.442695
      %v1362 = vpow.pop %v1361
      %v1363 = vmul.f32 %v1353, 1.442695
      %v1364 = vpow.pop %v1363
      %v1365 = vmul.f32 %v1354, 1.442695
      %v1366 = vpow.pop %v1365
      %v1367 = vmul.f32 %v1355, 1.442695
      %v1368 = vpow.pop %v1367
      %v1369 = vmul.f32 %v1356, 1.442695
      %v1370 = vpow.pop %v1369
      %v1371 = vmul.f32 %v1357, 1.442695
      %v1372 = vpow.pop %v1371
      %v1373 = vmul.f32 %v1358, 1.442695
      %v1374 = vpow.pop %v1373
      %v1375 = vadd.f32 %v1360, 1.0
      %v1376 = vadd.f32 %v1362, 1.0
      %v1377 = vadd.f32 %v1364, 1.0
      %v1378 = vadd.f32 %v1366, 1.0
      %v1379 = vadd.f32 %v1368, 1.0
      %v1380 = vadd.f32 %v1370, 1.0
      %v1381 = vadd.f32 %v1372, 1.0
      %v1382 = vadd.f32 %v1374, 1.0
      %v1383 = vrcp.pop %v1375
      %v1384 = vmul.f32 1.0, %v1383
      %v1385 = vrcp.pop %v1376
      %v1386 = vmul.f32 1.0, %v1385
      %v1387 = vrcp.pop %v1377
      %v1388 = vmul.f32 1.0, %v1387
      %v1389 = vrcp.pop %v1378
      %v1390 = vmul.f32 1.0, %v1389
      %v1391 = vrcp.pop %v1379
      %v1392 = vmul.f32 1.0, %v1391
      %v1393 = vrcp.pop %v1380
      %v1394 = vmul.f32 1.0, %v1393
      %v1395 = vrcp.pop %v1381
      %v1396 = vmul.f32 1.0, %v1395
      %v1397 = vrcp.pop %v1382
      %v1398 = vmul.f32 1.0, %v1397
      %v1399 = vmul.f32 %v1326, %v1384
      %v1400 = vmul.f32 %v1328, %v1386
      %v1401 = vmul.f32 %v1333, %v1388
      %v1402 = vmul.f32 %v1335, %v1390
      %v1403 = vmul.f32 %v1340, %v1392
      %v1404 = vmul.f32 %v1342, %v1394
      %v1405 = vmul.f32 %v1347, %v1396
      %v1406 = vmul.f32 %v1349, %v1398
      %1407 = vset.pattern.permute.xlu0 12
      %1408 = vperm.xlu0 %1407, %v707
      %v1409 = vpop.permute.xlu0 %1408
      %1411 = vset.pattern.permute.xlu0 12
      %1412 = vperm.xlu0 %1411, %v708
      %v1413 = vpop.permute.xlu0 %1412
      %1415 = vset.pattern.permute.xlu0 12
      %1416 = vperm.xlu0 %1415, %v709
      %v1417 = vpop.permute.xlu0 %1416
      %1419 = vset.pattern.permute.xlu0 12
      %1420 = vperm.xlu0 %1419, %v710
      %v1421 = vpop.permute.xlu0 %1420
      %v1423 = vmul.f32 %v1399, %v1409
      %v1424 = vmul.f32 %v1400, %v1409
      %v1425 = vmul.f32 %v1401, %v1413
      %v1426 = vmul.f32 %v1402, %v1413
      %v1427 = vmul.f32 %v1403, %v1417
      %v1428 = vmul.f32 %v1404, %v1417
      %v1429 = vmul.f32 %v1405, %v1421
      %v1430 = vmul.f32 %v1406, %v1421
      %1431 = vrot.lane.b32.xlu0 %v1399, 17
      %v1432 = vpop.permute.xlu0 %1431
      %1433 = vrot.lane.b32.xlu0 %v1401, 17
      %v1434 = vpop.permute.xlu0 %1433
      %1435 = vrot.lane.b32.xlu0 %v1403, 17
      %v1436 = vpop.permute.xlu0 %1435
      %1437 = vrot.lane.b32.xlu0 %v1405, 17
      %v1438 = vpop.permute.xlu0 %1437
      %1439 = vrot.lane.b32.xlu0 %v1400, 17
      %v1440 = vpop.permute.xlu0 %1439
      %1441 = vrot.lane.b32.xlu0 %v1402, 17
      %v1442 = vpop.permute.xlu0 %1441
      %1443 = vrot.lane.b32.xlu0 %v1404, 17
      %v1444 = vpop.permute.xlu0 %1443
      %1445 = vrot.lane.b32.xlu0 %v1406, 17
      %v1446 = vpop.permute.xlu0 %1445
      %v1447 = vlaneseq
      %v1448 = vand.u32 %v1447, 127
      %vm1449 = vcmp.lt.s32.totalorder %v1448, 17
      %v1450 = vsel %vm1449, %v1432, %v1440
      %v1451 = vsel %vm1449, %v1434, %v1442
      %v1452 = vsel %vm1449, %v1436, %v1444
      %v1453 = vsel %vm1449, %v1438, %v1446
      %v1454 = vsel %vm1449, %v1440, %v1432
      %v1455 = vsel %vm1449, %v1442, %v1434
      %v1456 = vsel %vm1449, %v1444, %v1436
      %v1457 = vsel %vm1449, %v1446, %v1438
      %v1458 = vld [vmem:[%s1] ss:$8 sm:$0x3]
      %v1460 = vlaneseq
      %v1461 = vshrl.u32 %v1460, 7
      %v1462 = vsub.s32 0, %v1461
      %v1463 = vrot.slane %v1458, %v1462
      %v1464 = vlaneseq
      %v1465 = vshrl.u32 %v1464, 7
      %v1466 = vsub.s32 1, %v1465
      %v1467 = vrot.slane %v1458, %v1466
      %v1470 = vmul.f32 %v1454, %v1463
      %v1471 = vmul.f32 %v1450, %v1467
      %v1472 = vmul.f32 %v1455, %v1463
      %v1473 = vmul.f32 %v1451, %v1467
      %v1474 = vmul.f32 %v1456, %v1463
      %v1475 = vmul.f32 %v1452, %v1467
      %v1476 = vmul.f32 %v1457, %v1463
      %v1477 = vmul.f32 %v1453, %v1467
      %1478 = vset.pattern.permute.xlu0 8
      %1479 = vperm.xlu0 %1478, %v707
      %v1480 = vpop.permute.xlu0 %1479
      %1482 = vset.pattern.permute.xlu0 8
      %1483 = vperm.xlu0 %1482, %v708
      %v1484 = vpop.permute.xlu0 %1483
      %1486 = vset.pattern.permute.xlu0 8
      %1487 = vperm.xlu0 %1486, %v709
      %v1488 = vpop.permute.xlu0 %1487
      %1490 = vset.pattern.permute.xlu0 8
      %1491 = vperm.xlu0 %1490, %v710
      %v1492 = vpop.permute.xlu0 %1491
      %v1494 = vmul.f32 %v1470, %v1480
      %v1495 = vmul.f32 %v1471, %v1480
      %v1496 = vmul.f32 %v1472, %v1484
      %v1497 = vmul.f32 %v1473, %v1484
      %v1498 = vmul.f32 %v1474, %v1488
      %v1499 = vmul.f32 %v1475, %v1488
      %v1500 = vmul.f32 %v1476, %v1492
      %v1501 = vmul.f32 %v1477, %v1492
      %v1502 = vadd.f32 %v1423, %v1494
      %v1503 = vadd.f32 %v1424, %v1495
      %v1504 = vadd.f32 %v1425, %v1496
      %v1505 = vadd.f32 %v1426, %v1497
      %v1506 = vadd.f32 %v1427, %v1498
      %v1507 = vadd.f32 %v1428, %v1499
      %v1508 = vadd.f32 %v1429, %v1500
      %v1509 = vadd.f32 %v1430, %v1501
      %1510 = vrot.lane.b32.xlu0 %v1399, 16
      %v1511 = vpop.permute.xlu0 %1510
      %1512 = vrot.lane.b32.xlu0 %v1401, 16
      %v1513 = vpop.permute.xlu0 %1512
      %1514 = vrot.lane.b32.xlu0 %v1403, 16
      %v1515 = vpop.permute.xlu0 %1514
      %1516 = vrot.lane.b32.xlu0 %v1405, 16
      %v1517 = vpop.permute.xlu0 %1516
      %1518 = vrot.lane.b32.xlu0 %v1400, 16
      %v1519 = vpop.permute.xlu0 %1518
      %1520 = vrot.lane.b32.xlu0 %v1402, 16
      %v1521 = vpop.permute.xlu0 %1520
      %1522 = vrot.lane.b32.xlu0 %v1404, 16
      %v1523 = vpop.permute.xlu0 %1522
      %1524 = vrot.lane.b32.xlu0 %v1406, 16
      %v1525 = vpop.permute.xlu0 %1524
      %vm1526 = vcmp.lt.s32.totalorder %v1448, 16
      %v1527 = vsel %vm1526, %v1511, %v1519
      %v1528 = vsel %vm1526, %v1513, %v1521
      %v1529 = vsel %vm1526, %v1515, %v1523
      %v1530 = vsel %vm1526, %v1517, %v1525
      %v1531 = vsel %vm1526, %v1519, %v1511
      %v1532 = vsel %vm1526, %v1521, %v1513
      %v1533 = vsel %vm1526, %v1523, %v1515
      %v1534 = vsel %vm1526, %v1525, %v1517
      %s1535 = scalar_lea.vmem %s1, 1
      %v1536 = vld [vmem:[%s1535] ss:$8 sm:$0x3]
      %v1538 = vlaneseq
      %v1539 = vshrl.u32 %v1538, 7
      %v1540 = vsub.s32 0, %v1539
      %v1541 = vrot.slane %v1536, %v1540
      %v1542 = vlaneseq
      %v1543 = vshrl.u32 %v1542, 7
      %v1544 = vsub.s32 1, %v1543
      %v1545 = vrot.slane %v1536, %v1544
      %v1548 = vmul.f32 %v1531, %v1541
      %v1549 = vmul.f32 %v1527, %v1545
      %v1550 = vmul.f32 %v1532, %v1541
      %v1551 = vmul.f32 %v1528, %v1545
      %v1552 = vmul.f32 %v1533, %v1541
      %v1553 = vmul.f32 %v1529, %v1545
      %v1554 = vmul.f32 %v1534, %v1541
      %v1555 = vmul.f32 %v1530, %v1545
      %1556 = vset.pattern.permute.xlu0 9
      %1557 = vperm.xlu0 %1556, %v707
      %v1558 = vpop.permute.xlu0 %1557
      %1560 = vset.pattern.permute.xlu0 9
      %1561 = vperm.xlu0 %1560, %v708
      %v1562 = vpop.permute.xlu0 %1561
      %1564 = vset.pattern.permute.xlu0 9
      %1565 = vperm.xlu0 %1564, %v709
      %v1566 = vpop.permute.xlu0 %1565
      %1568 = vset.pattern.permute.xlu0 9
      %1569 = vperm.xlu0 %1568, %v710
      %v1570 = vpop.permute.xlu0 %1569
      %v1572 = vmul.f32 %v1548, %v1558
      %v1573 = vmul.f32 %v1549, %v1558
      %v1574 = vmul.f32 %v1550, %v1562
      %v1575 = vmul.f32 %v1551, %v1562
      %v1576 = vmul.f32 %v1552, %v1566
      %v1577 = vmul.f32 %v1553, %v1566
      %v1578 = vmul.f32 %v1554, %v1570
      %v1579 = vmul.f32 %v1555, %v1570
      %v1580 = vadd.f32 %v1502, %v1572
      %v1581 = vadd.f32 %v1503, %v1573
      %v1582 = vadd.f32 %v1504, %v1574
      %v1583 = vadd.f32 %v1505, %v1575
      %v1584 = vadd.f32 %v1506, %v1576
      %v1585 = vadd.f32 %v1507, %v1577
      %v1586 = vadd.f32 %v1508, %v1578
      %v1587 = vadd.f32 %v1509, %v1579
      %1588 = vrot.lane.b32.xlu0 %v1399, 15
      %v1589 = vpop.permute.xlu0 %1588
      %1590 = vrot.lane.b32.xlu0 %v1401, 15
      %v1591 = vpop.permute.xlu0 %1590
      %1592 = vrot.lane.b32.xlu0 %v1403, 15
      %v1593 = vpop.permute.xlu0 %1592
      %1594 = vrot.lane.b32.xlu0 %v1405, 15
      %v1595 = vpop.permute.xlu0 %1594
      %1596 = vrot.lane.b32.xlu0 %v1400, 15
      %v1597 = vpop.permute.xlu0 %1596
      %1598 = vrot.lane.b32.xlu0 %v1402, 15
      %v1599 = vpop.permute.xlu0 %1598
      %1600 = vrot.lane.b32.xlu0 %v1404, 15
      %v1601 = vpop.permute.xlu0 %1600
      %1602 = vrot.lane.b32.xlu0 %v1406, 15
      %v1603 = vpop.permute.xlu0 %1602
      %vm1604 = vcmp.lt.s32.totalorder %v1448, 15
      %v1605 = vsel %vm1604, %v1589, %v1597
      %v1606 = vsel %vm1604, %v1591, %v1599
      %v1607 = vsel %vm1604, %v1593, %v1601
      %v1608 = vsel %vm1604, %v1595, %v1603
      %v1609 = vsel %vm1604, %v1597, %v1589
      %v1610 = vsel %vm1604, %v1599, %v1591
      %v1611 = vsel %vm1604, %v1601, %v1593
      %v1612 = vsel %vm1604, %v1603, %v1595
      %s1613 = scalar_lea.vmem %s1, 2
      %v1614 = vld [vmem:[%s1613] ss:$8 sm:$0x3]
      %v1616 = vlaneseq
      %v1617 = vshrl.u32 %v1616, 7
      %v1618 = vsub.s32 0, %v1617
      %v1619 = vrot.slane %v1614, %v1618
      %v1620 = vlaneseq
      %v1621 = vshrl.u32 %v1620, 7
      %v1622 = vsub.s32 1, %v1621
      %v1623 = vrot.slane %v1614, %v1622
      %v1626 = vmul.f32 %v1609, %v1619
      %v1627 = vmul.f32 %v1605, %v1623
      %v1628 = vmul.f32 %v1610, %v1619
      %v1629 = vmul.f32 %v1606, %v1623
      %v1630 = vmul.f32 %v1611, %v1619
      %v1631 = vmul.f32 %v1607, %v1623
      %v1632 = vmul.f32 %v1612, %v1619
      %v1633 = vmul.f32 %v1608, %v1623
      %1634 = vset.pattern.permute.xlu0 10
      %1635 = vperm.xlu0 %1634, %v707
      %v1636 = vpop.permute.xlu0 %1635
      %1638 = vset.pattern.permute.xlu0 10
      %1639 = vperm.xlu0 %1638, %v708
      %v1640 = vpop.permute.xlu0 %1639
      %1642 = vset.pattern.permute.xlu0 10
      %1643 = vperm.xlu0 %1642, %v709
      %v1644 = vpop.permute.xlu0 %1643
      %1646 = vset.pattern.permute.xlu0 10
      %1647 = vperm.xlu0 %1646, %v710
      %v1648 = vpop.permute.xlu0 %1647
      %v1650 = vmul.f32 %v1626, %v1636
      %v1651 = vmul.f32 %v1627, %v1636
      %v1652 = vmul.f32 %v1628, %v1640
      %v1653 = vmul.f32 %v1629, %v1640
      %v1654 = vmul.f32 %v1630, %v1644
      %v1655 = vmul.f32 %v1631, %v1644
      %v1656 = vmul.f32 %v1632, %v1648
      %v1657 = vmul.f32 %v1633, %v1648
      %v1658 = vadd.f32 %v1580, %v1650
      %v1659 = vadd.f32 %v1581, %v1651
      %v1660 = vadd.f32 %v1582, %v1652
      %v1661 = vadd.f32 %v1583, %v1653
      %v1662 = vadd.f32 %v1584, %v1654
      %v1663 = vadd.f32 %v1585, %v1655
      %v1664 = vadd.f32 %v1586, %v1656
      %v1665 = vadd.f32 %v1587, %v1657
      %1666 = vrot.lane.b32.xlu0 %v1399, 1
      %v1667 = vpop.permute.xlu0 %1666
      %1668 = vrot.lane.b32.xlu0 %v1401, 1
      %v1669 = vpop.permute.xlu0 %1668
      %1670 = vrot.lane.b32.xlu0 %v1403, 1
      %v1671 = vpop.permute.xlu0 %1670
      %1672 = vrot.lane.b32.xlu0 %v1405, 1
      %v1673 = vpop.permute.xlu0 %1672
      %1674 = vrot.lane.b32.xlu0 %v1400, 1
      %v1675 = vpop.permute.xlu0 %1674
      %1676 = vrot.lane.b32.xlu0 %v1402, 1
      %v1677 = vpop.permute.xlu0 %1676
      %1678 = vrot.lane.b32.xlu0 %v1404, 1
      %v1679 = vpop.permute.xlu0 %1678
      %1680 = vrot.lane.b32.xlu0 %v1406, 1
      %v1681 = vpop.permute.xlu0 %1680
      %vm1682 = vcmp.lt.s32.totalorder %v1448, 1
      %v1683 = vsel %vm1682, %v1667, %v1675
      %v1684 = vsel %vm1682, %v1669, %v1677
      %v1685 = vsel %vm1682, %v1671, %v1679
      %v1686 = vsel %vm1682, %v1673, %v1681
      %v1687 = vsel %vm1682, %v1675, %v1667
      %v1688 = vsel %vm1682, %v1677, %v1669
      %v1689 = vsel %vm1682, %v1679, %v1671
      %v1690 = vsel %vm1682, %v1681, %v1673
      %s1691 = scalar_lea.vmem %s1, 3
      %v1692 = vld [vmem:[%s1691] ss:$8 sm:$0x3]
      %v1694 = vlaneseq
      %v1695 = vshrl.u32 %v1694, 7
      %v1696 = vsub.s32 0, %v1695
      %v1697 = vrot.slane %v1692, %v1696
      %v1698 = vlaneseq
      %v1699 = vshrl.u32 %v1698, 7
      %v1700 = vsub.s32 1, %v1699
      %v1701 = vrot.slane %v1692, %v1700
      %v1704 = vmul.f32 %v1687, %v1697
      %v1705 = vmul.f32 %v1683, %v1701
      %v1706 = vmul.f32 %v1688, %v1697
      %v1707 = vmul.f32 %v1684, %v1701
      %v1708 = vmul.f32 %v1689, %v1697
      %v1709 = vmul.f32 %v1685, %v1701
      %v1710 = vmul.f32 %v1690, %v1697
      %v1711 = vmul.f32 %v1686, %v1701
      %1712 = vset.pattern.permute.xlu0 11
      %1713 = vperm.xlu0 %1712, %v707
      %v1714 = vpop.permute.xlu0 %1713
      %1716 = vset.pattern.permute.xlu0 11
      %1717 = vperm.xlu0 %1716, %v708
      %v1718 = vpop.permute.xlu0 %1717
      %1720 = vset.pattern.permute.xlu0 11
      %1721 = vperm.xlu0 %1720, %v709
      %v1722 = vpop.permute.xlu0 %1721
      %1724 = vset.pattern.permute.xlu0 11
      %1725 = vperm.xlu0 %1724, %v710
      %v1726 = vpop.permute.xlu0 %1725
      %v1728 = vmul.f32 %v1704, %v1714
      %v1729 = vmul.f32 %v1705, %v1714
      %v1730 = vmul.f32 %v1706, %v1718
      %v1731 = vmul.f32 %v1707, %v1718
      %v1732 = vmul.f32 %v1708, %v1722
      %v1733 = vmul.f32 %v1709, %v1722
      %v1734 = vmul.f32 %v1710, %v1726
      %v1735 = vmul.f32 %v1711, %v1726
      %v1736 = vadd.f32 %v1658, %v1728
      %v1737 = vadd.f32 %v1659, %v1729
      %v1738 = vadd.f32 %v1660, %v1730
      %v1739 = vadd.f32 %v1661, %v1731
      %v1740 = vadd.f32 %v1662, %v1732
      %v1741 = vadd.f32 %v1663, %v1733
      %v1742 = vadd.f32 %v1664, %v1734
      %v1743 = vadd.f32 %v1665, %v1735
      %1744 = vrot.lane.b32.xlu0 %v1399, 127
      %v1745 = vpop.permute.xlu0 %1744
      %1746 = vrot.lane.b32.xlu0 %v1401, 127
      %v1747 = vpop.permute.xlu0 %1746
      %1748 = vrot.lane.b32.xlu0 %v1403, 127
      %v1749 = vpop.permute.xlu0 %1748
      %1750 = vrot.lane.b32.xlu0 %v1405, 127
      %v1751 = vpop.permute.xlu0 %1750
      %1752 = vrot.lane.b32.xlu0 %v1400, 127
      %v1753 = vpop.permute.xlu0 %1752
      %1754 = vrot.lane.b32.xlu0 %v1402, 127
      %v1755 = vpop.permute.xlu0 %1754
      %1756 = vrot.lane.b32.xlu0 %v1404, 127
      %v1757 = vpop.permute.xlu0 %1756
      %1758 = vrot.lane.b32.xlu0 %v1406, 127
      %v1759 = vpop.permute.xlu0 %1758
      %vm1760 = vcmp.lt.s32.totalorder %v1448, 127
      %v1761 = vsel %vm1760, %v1745, %v1753
      %v1762 = vsel %vm1760, %v1747, %v1755
      %v1763 = vsel %vm1760, %v1749, %v1757
      %v1764 = vsel %vm1760, %v1751, %v1759
      %v1765 = vsel %vm1760, %v1753, %v1745
      %v1766 = vsel %vm1760, %v1755, %v1747
      %v1767 = vsel %vm1760, %v1757, %v1749
      %v1768 = vsel %vm1760, %v1759, %v1751
      %s1769 = scalar_lea.vmem %s1, 5
      %v1770 = vld [vmem:[%s1769] ss:$8 sm:$0x3]
      %v1772 = vlaneseq
      %v1773 = vshrl.u32 %v1772, 7
      %v1774 = vsub.s32 0, %v1773
      %v1775 = vrot.slane %v1770, %v1774
      %v1776 = vlaneseq
      %v1777 = vshrl.u32 %v1776, 7
      %v1778 = vsub.s32 1, %v1777
      %v1779 = vrot.slane %v1770, %v1778
      %v1782 = vmul.f32 %v1761, %v1775
      %v1783 = vmul.f32 %v1765, %v1779
      %v1784 = vmul.f32 %v1762, %v1775
      %v1785 = vmul.f32 %v1766, %v1779
      %v1786 = vmul.f32 %v1763, %v1775
      %v1787 = vmul.f32 %v1767, %v1779
      %v1788 = vmul.f32 %v1764, %v1775
      %v1789 = vmul.f32 %v1768, %v1779
      %1790 = vset.pattern.permute.xlu0 13
      %1791 = vperm.xlu0 %1790, %v707
      %v1792 = vpop.permute.xlu0 %1791
      %1794 = vset.pattern.permute.xlu0 13
      %1795 = vperm.xlu0 %1794, %v708
      %v1796 = vpop.permute.xlu0 %1795
      %1798 = vset.pattern.permute.xlu0 13
      %1799 = vperm.xlu0 %1798, %v709
      %v1800 = vpop.permute.xlu0 %1799
      %1802 = vset.pattern.permute.xlu0 13
      %1803 = vperm.xlu0 %1802, %v710
      %v1804 = vpop.permute.xlu0 %1803
      %v1806 = vmul.f32 %v1782, %v1792
      %v1807 = vmul.f32 %v1783, %v1792
      %v1808 = vmul.f32 %v1784, %v1796
      %v1809 = vmul.f32 %v1785, %v1796
      %v1810 = vmul.f32 %v1786, %v1800
      %v1811 = vmul.f32 %v1787, %v1800
      %v1812 = vmul.f32 %v1788, %v1804
      %v1813 = vmul.f32 %v1789, %v1804
      %v1814 = vadd.f32 %v1736, %v1806
      %v1815 = vadd.f32 %v1737, %v1807
      %v1816 = vadd.f32 %v1738, %v1808
      %v1817 = vadd.f32 %v1739, %v1809
      %v1818 = vadd.f32 %v1740, %v1810
      %v1819 = vadd.f32 %v1741, %v1811
      %v1820 = vadd.f32 %v1742, %v1812
      %v1821 = vadd.f32 %v1743, %v1813
      %1822 = vrot.lane.b32.xlu0 %v1399, 113
      %v1823 = vpop.permute.xlu0 %1822
      %1824 = vrot.lane.b32.xlu0 %v1401, 113
      %v1825 = vpop.permute.xlu0 %1824
      %1826 = vrot.lane.b32.xlu0 %v1403, 113
      %v1827 = vpop.permute.xlu0 %1826
      %1828 = vrot.lane.b32.xlu0 %v1405, 113
      %v1829 = vpop.permute.xlu0 %1828
      %1830 = vrot.lane.b32.xlu0 %v1400, 113
      %v1831 = vpop.permute.xlu0 %1830
      %1832 = vrot.lane.b32.xlu0 %v1402, 113
      %v1833 = vpop.permute.xlu0 %1832
      %1834 = vrot.lane.b32.xlu0 %v1404, 113
      %v1835 = vpop.permute.xlu0 %1834
      %1836 = vrot.lane.b32.xlu0 %v1406, 113
      %v1837 = vpop.permute.xlu0 %1836
      %vm1838 = vcmp.lt.s32.totalorder %v1448, 113
      %v1839 = vsel %vm1838, %v1823, %v1831
      %v1840 = vsel %vm1838, %v1825, %v1833
      %v1841 = vsel %vm1838, %v1827, %v1835
      %v1842 = vsel %vm1838, %v1829, %v1837
      %v1843 = vsel %vm1838, %v1831, %v1823
      %v1844 = vsel %vm1838, %v1833, %v1825
      %v1845 = vsel %vm1838, %v1835, %v1827
      %v1846 = vsel %vm1838, %v1837, %v1829
      %s1847 = scalar_lea.vmem %s1, 6
      %v1848 = vld [vmem:[%s1847] ss:$8 sm:$0x3]
      %v1850 = vlaneseq
      %v1851 = vshrl.u32 %v1850, 7
      %v1852 = vsub.s32 0, %v1851
      %v1853 = vrot.slane %v1848, %v1852
      %v1854 = vlaneseq
      %v1855 = vshrl.u32 %v1854, 7
      %v1856 = vsub.s32 1, %v1855
      %v1857 = vrot.slane %v1848, %v1856
      %v1860 = vmul.f32 %v1839, %v1853
      %v1861 = vmul.f32 %v1843, %v1857
      %v1862 = vmul.f32 %v1840, %v1853
      %v1863 = vmul.f32 %v1844, %v1857
      %v1864 = vmul.f32 %v1841, %v1853
      %v1865 = vmul.f32 %v1845, %v1857
      %v1866 = vmul.f32 %v1842, %v1853
      %v1867 = vmul.f32 %v1846, %v1857
      %1868 = vset.pattern.permute.xlu0 14
      %1869 = vperm.xlu0 %1868, %v707
      %v1870 = vpop.permute.xlu0 %1869
      %1872 = vset.pattern.permute.xlu0 14
      %1873 = vperm.xlu0 %1872, %v708
      %v1874 = vpop.permute.xlu0 %1873
      %1876 = vset.pattern.permute.xlu0 14
      %1877 = vperm.xlu0 %1876, %v709
      %v1878 = vpop.permute.xlu0 %1877
      %1880 = vset.pattern.permute.xlu0 14
      %1881 = vperm.xlu0 %1880, %v710
      %v1882 = vpop.permute.xlu0 %1881
      %v1884 = vmul.f32 %v1860, %v1870
      %v1885 = vmul.f32 %v1861, %v1870
      %v1886 = vmul.f32 %v1862, %v1874
      %v1887 = vmul.f32 %v1863, %v1874
      %v1888 = vmul.f32 %v1864, %v1878
      %v1889 = vmul.f32 %v1865, %v1878
      %v1890 = vmul.f32 %v1866, %v1882
      %v1891 = vmul.f32 %v1867, %v1882
      %v1892 = vadd.f32 %v1814, %v1884
      %v1893 = vadd.f32 %v1815, %v1885
      %v1894 = vadd.f32 %v1816, %v1886
      %v1895 = vadd.f32 %v1817, %v1887
      %v1896 = vadd.f32 %v1818, %v1888
      %v1897 = vadd.f32 %v1819, %v1889
      %v1898 = vadd.f32 %v1820, %v1890
      %v1899 = vadd.f32 %v1821, %v1891
      %1900 = vrot.lane.b32.xlu0 %v1399, 112
      %v1901 = vpop.permute.xlu0 %1900
      %1902 = vrot.lane.b32.xlu0 %v1401, 112
      %v1903 = vpop.permute.xlu0 %1902
      %1904 = vrot.lane.b32.xlu0 %v1403, 112
      %v1905 = vpop.permute.xlu0 %1904
      %1906 = vrot.lane.b32.xlu0 %v1405, 112
      %v1907 = vpop.permute.xlu0 %1906
      %1908 = vrot.lane.b32.xlu0 %v1400, 112
      %v1909 = vpop.permute.xlu0 %1908
      %1910 = vrot.lane.b32.xlu0 %v1402, 112
      %v1911 = vpop.permute.xlu0 %1910
      %1912 = vrot.lane.b32.xlu0 %v1404, 112
      %v1913 = vpop.permute.xlu0 %1912
      %1914 = vrot.lane.b32.xlu0 %v1406, 112
      %v1915 = vpop.permute.xlu0 %1914
      %vm1916 = vcmp.lt.s32.totalorder %v1448, 112
      %v1917 = vsel %vm1916, %v1901, %v1909
      %v1918 = vsel %vm1916, %v1903, %v1911
      %v1919 = vsel %vm1916, %v1905, %v1913
      %v1920 = vsel %vm1916, %v1907, %v1915
      %v1921 = vsel %vm1916, %v1909, %v1901
      %v1922 = vsel %vm1916, %v1911, %v1903
      %v1923 = vsel %vm1916, %v1913, %v1905
      %v1924 = vsel %vm1916, %v1915, %v1907
      %s1925 = scalar_lea.vmem %s1, 7
      %v1926 = vld [vmem:[%s1925] ss:$8 sm:$0x3]
      %v1928 = vlaneseq
      %v1929 = vshrl.u32 %v1928, 7
      %v1930 = vsub.s32 0, %v1929
      %v1931 = vrot.slane %v1926, %v1930
      %v1932 = vlaneseq
      %v1933 = vshrl.u32 %v1932, 7
      %v1934 = vsub.s32 1, %v1933
      %v1935 = vrot.slane %v1926, %v1934
      %v1938 = vmul.f32 %v1917, %v1931
      %v1939 = vmul.f32 %v1921, %v1935
      %v1940 = vmul.f32 %v1918, %v1931
      %v1941 = vmul.f32 %v1922, %v1935
      %v1942 = vmul.f32 %v1919, %v1931
      %v1943 = vmul.f32 %v1923, %v1935
      %v1944 = vmul.f32 %v1920, %v1931
      %v1945 = vmul.f32 %v1924, %v1935
      %1946 = vset.pattern.permute.xlu0 15
      %1947 = vperm.xlu0 %1946, %v707
      %v1948 = vpop.permute.xlu0 %1947
      %1950 = vset.pattern.permute.xlu0 15
      %1951 = vperm.xlu0 %1950, %v708
      %v1952 = vpop.permute.xlu0 %1951
      %1954 = vset.pattern.permute.xlu0 15
      %1955 = vperm.xlu0 %1954, %v709
      %v1956 = vpop.permute.xlu0 %1955
      %1958 = vset.pattern.permute.xlu0 15
      %1959 = vperm.xlu0 %1958, %v710
      %v1960 = vpop.permute.xlu0 %1959
      %v1962 = vmul.f32 %v1938, %v1948
      %v1963 = vmul.f32 %v1939, %v1948
      %v1964 = vmul.f32 %v1940, %v1952
      %v1965 = vmul.f32 %v1941, %v1952
      %v1966 = vmul.f32 %v1942, %v1956
      %v1967 = vmul.f32 %v1943, %v1956
      %v1968 = vmul.f32 %v1944, %v1960
      %v1969 = vmul.f32 %v1945, %v1960
      %v1970 = vadd.f32 %v1892, %v1962
      %v1971 = vadd.f32 %v1893, %v1963
      %v1972 = vadd.f32 %v1894, %v1964
      %v1973 = vadd.f32 %v1895, %v1965
      %v1974 = vadd.f32 %v1896, %v1966
      %v1975 = vadd.f32 %v1897, %v1967
      %v1976 = vadd.f32 %v1898, %v1968
      %v1977 = vadd.f32 %v1899, %v1969
      %1978 = vrot.lane.b32.xlu0 %v1399, 111
      %v1979 = vpop.permute.xlu0 %1978
      %1980 = vrot.lane.b32.xlu0 %v1401, 111
      %v1981 = vpop.permute.xlu0 %1980
      %1982 = vrot.lane.b32.xlu0 %v1403, 111
      %v1983 = vpop.permute.xlu0 %1982
      %1984 = vrot.lane.b32.xlu0 %v1405, 111
      %v1985 = vpop.permute.xlu0 %1984
      %1986 = vrot.lane.b32.xlu0 %v1400, 111
      %v1987 = vpop.permute.xlu0 %1986
      %1988 = vrot.lane.b32.xlu0 %v1402, 111
      %v1989 = vpop.permute.xlu0 %1988
      %1990 = vrot.lane.b32.xlu0 %v1404, 111
      %v1991 = vpop.permute.xlu0 %1990
      %1992 = vrot.lane.b32.xlu0 %v1406, 111
      %v1993 = vpop.permute.xlu0 %1992
      %vm1994 = vcmp.lt.s32.totalorder %v1448, 111
      %v1995 = vsel %vm1994, %v1979, %v1987
      %v1996 = vsel %vm1994, %v1981, %v1989
      %v1997 = vsel %vm1994, %v1983, %v1991
      %v1998 = vsel %vm1994, %v1985, %v1993
      %v1999 = vsel %vm1994, %v1987, %v1979
      %v2000 = vsel %vm1994, %v1989, %v1981
      %v2001 = vsel %vm1994, %v1991, %v1983
      %v2002 = vsel %vm1994, %v1993, %v1985
      %s2003 = scalar_lea.vmem %s1, 16
      %v2004 = vld [vmem:[%s2003] ss:$8 sm:$0x3]
      %v2006 = vlaneseq
      %v2007 = vshrl.u32 %v2006, 7
      %v2008 = vsub.s32 0, %v2007
      %v2009 = vrot.slane %v2004, %v2008
      %v2010 = vlaneseq
      %v2011 = vshrl.u32 %v2010, 7
      %v2012 = vsub.s32 1, %v2011
      %v2013 = vrot.slane %v2004, %v2012
      %v2016 = vmul.f32 %v1995, %v2009
      %v2017 = vmul.f32 %v1999, %v2013
      %v2018 = vmul.f32 %v1996, %v2009
      %v2019 = vmul.f32 %v2000, %v2013
      %v2020 = vmul.f32 %v1997, %v2009
      %v2021 = vmul.f32 %v2001, %v2013
      %v2022 = vmul.f32 %v1998, %v2009
      %v2023 = vmul.f32 %v2002, %v2013
      %2024 = vset.pattern.permute.xlu0 16
      %2025 = vperm.xlu0 %2024, %v707
      %v2026 = vpop.permute.xlu0 %2025
      %2028 = vset.pattern.permute.xlu0 16
      %2029 = vperm.xlu0 %2028, %v708
      %v2030 = vpop.permute.xlu0 %2029
      %2032 = vset.pattern.permute.xlu0 16
      %2033 = vperm.xlu0 %2032, %v709
      %v2034 = vpop.permute.xlu0 %2033
      %2036 = vset.pattern.permute.xlu0 16
      %2037 = vperm.xlu0 %2036, %v710
      %v2038 = vpop.permute.xlu0 %2037
      %v2040 = vmul.f32 %v2016, %v2026
      %v2041 = vmul.f32 %v2017, %v2026
      %v2042 = vmul.f32 %v2018, %v2030
      %v2043 = vmul.f32 %v2019, %v2030
      %v2044 = vmul.f32 %v2020, %v2034
      %v2045 = vmul.f32 %v2021, %v2034
      %v2046 = vmul.f32 %v2022, %v2038
      %v2047 = vmul.f32 %v2023, %v2038
      %v2048 = vadd.f32 %v1970, %v2040
      %v2049 = vadd.f32 %v1971, %v2041
      %v2050 = vadd.f32 %v1972, %v2042
      %v2051 = vadd.f32 %v1973, %v2043
      %v2052 = vadd.f32 %v1974, %v2044
      %v2053 = vadd.f32 %v1975, %v2045
      %v2054 = vadd.f32 %v1976, %v2046
      %v2055 = vadd.f32 %v1977, %v2047
      %2056 = vset.pattern.permute.xlu0 24
      %2057 = vperm.xlu0 %2056, %v707
      %v2058 = vpop.permute.xlu0 %2057
      %2060 = vset.pattern.permute.xlu0 24
      %2061 = vperm.xlu0 %2060, %v708
      %v2062 = vpop.permute.xlu0 %2061
      %2064 = vset.pattern.permute.xlu0 24
      %2065 = vperm.xlu0 %2064, %v709
      %v2066 = vpop.permute.xlu0 %2065
      %2068 = vset.pattern.permute.xlu0 24
      %2069 = vperm.xlu0 %2068, %v710
      %v2070 = vpop.permute.xlu0 %2069
      %v2072 = vadd.f32 %v2048, %v2058
      %v2073 = vadd.f32 %v2049, %v2058
      %v2074 = vadd.f32 %v2050, %v2062
      %v2075 = vadd.f32 %v2051, %v2062
      %v2076 = vadd.f32 %v2052, %v2066
      %v2077 = vadd.f32 %v2053, %v2066
      %v2078 = vadd.f32 %v2054, %v2070
      %v2079 = vadd.f32 %v2055, %v2070
      %v2080 = vxor.u32 %v2072, 2147483648
      %v2081 = vxor.u32 %v2073, 2147483648
      %v2082 = vxor.u32 %v2074, 2147483648
      %v2083 = vxor.u32 %v2075, 2147483648
      %v2084 = vxor.u32 %v2076, 2147483648
      %v2085 = vxor.u32 %v2077, 2147483648
      %v2086 = vxor.u32 %v2078, 2147483648
      %v2087 = vxor.u32 %v2079, 2147483648
      %v2088 = vmul.f32 %v2080, 1.442695
      %v2089 = vpow.pop %v2088
      %v2090 = vmul.f32 %v2081, 1.442695
      %v2091 = vpow.pop %v2090
      %v2092 = vmul.f32 %v2082, 1.442695
      %v2093 = vpow.pop %v2092
      %v2094 = vmul.f32 %v2083, 1.442695
      %v2095 = vpow.pop %v2094
      %v2096 = vmul.f32 %v2084, 1.442695
      %v2097 = vpow.pop %v2096
      %v2098 = vmul.f32 %v2085, 1.442695
      %v2099 = vpow.pop %v2098
      %v2100 = vmul.f32 %v2086, 1.442695
      %v2101 = vpow.pop %v2100
      %v2102 = vmul.f32 %v2087, 1.442695
      %v2103 = vpow.pop %v2102
      %v2104 = vadd.f32 %v2089, 1.0
      %v2105 = vadd.f32 %v2091, 1.0
      %v2106 = vadd.f32 %v2093, 1.0
      %v2107 = vadd.f32 %v2095, 1.0
      %v2108 = vadd.f32 %v2097, 1.0
      %v2109 = vadd.f32 %v2099, 1.0
      %v2110 = vadd.f32 %v2101, 1.0
      %v2111 = vadd.f32 %v2103, 1.0
      %v2112 = vrcp.pop %v2104
      %v2113 = vmul.f32 1.0, %v2112
      %v2114 = vrcp.pop %v2105
      %v2115 = vmul.f32 1.0, %v2114
      %v2116 = vrcp.pop %v2106
      %v2117 = vmul.f32 1.0, %v2116
      %v2118 = vrcp.pop %v2107
      %v2119 = vmul.f32 1.0, %v2118
      %v2120 = vrcp.pop %v2108
      %v2121 = vmul.f32 1.0, %v2120
      %v2122 = vrcp.pop %v2109
      %v2123 = vmul.f32 1.0, %v2122
      %v2124 = vrcp.pop %v2110
      %v2125 = vmul.f32 1.0, %v2124
      %v2126 = vrcp.pop %v2111
      %v2127 = vmul.f32 1.0, %v2126
      %v2128 = vmul.f32 %v2072, %v2113
      %v2129 = vmul.f32 %v2073, %v2115
      %v2130 = vmul.f32 %v2074, %v2117
      %v2131 = vmul.f32 %v2075, %v2119
      %v2132 = vmul.f32 %v2076, %v2121
      %v2133 = vmul.f32 %v2077, %v2123
      %v2134 = vmul.f32 %v2078, %v2125
      %v2135 = vmul.f32 %v2079, %v2127
      %v2136 = vadd.f32 %v2128, %v2129
      %2137 = vadd.xlane.f32.xlu0 %v2136
      %v2138 = vpop.xlane.xlu0 %2137
      %v2139 = vadd.f32 %v2130, %v2131
      %2140 = vadd.xlane.f32.xlu0 %v2139
      %v2141 = vpop.xlane.xlu0 %2140
      %v2142 = vadd.f32 %v2132, %v2133
      %2143 = vadd.xlane.f32.xlu0 %v2142
      %v2144 = vpop.xlane.xlu0 %2143
      %v2145 = vadd.f32 %v2134, %v2135
      %2146 = vadd.xlane.f32.xlu0 %v2145
      %v2147 = vpop.xlane.xlu0 %2146
      %v2148 = vmul.f32 %v2138, 0.00390625
      %v2149 = vmul.f32 %v2141, 0.00390625
      %v2150 = vmul.f32 %v2144, 0.00390625
      %v2151 = vmul.f32 %v2147, 0.00390625
      %v2152 = vld [vmem:[%s2] sm:$0x1]
      %v2153 = vmul.f32 %v707, %v2148
      %v2154 = vmul.f32 %v708, %v2149
      %v2155 = vmul.f32 %v709, %v2150
      %v2156 = vmul.f32 %v710, %v2151
      %vm2157 = vcmask 154760
      %v2158 = vsel %vm2157, %v2153, 0.0
      %v2159 = vsel %vm2157, %v2154, 0.0
      %v2160 = vadd.f32 %v2158, %v2159
      %v2161 = vsel %vm2157, %v2155, 0.0
      %v2162 = vadd.f32 %v2160, %v2161
      %v2163 = vsel %vm2157, %v2156, 0.0
      %v2164 = vadd.f32 %v2162, %v2163
      %v2165 = vrot.slane %v2164, 4
      %v2166 = vadd.f32 %v2164, %v2165
      %v2167 = vrot.slane %v2166, 2
      %v2168 = vadd.f32 %v2166, %v2167
      %v2169 = vrot.slane %v2168, 1
      %v2170 = vadd.f32 %v2168, %v2169
      %2172 = vrot.lane.b32.xlu0 %v2152, 124
      %v2173 = vpop.permute.xlu0 %2172
      %v2175 = vadd.f32 %v2170, %v2173
      %v2176 = vxor.u32 %v2175, 2147483648
      %v2177 = vmul.f32 %v2176, 1.442695
      %v2178 = vpow.pop %v2177
      %v2179 = vadd.f32 %v2178, 1.0
      %v2180 = vrcp.pop %v2179
      %v2181 = vmul.f32 1.0, %v2180
      %v2182 = vmul.f32 %v2175, %v2181
      %v2183 = vlaneseq
      %v2184 = vshrl.u32 %v2183, 7
      %v2185 = vsub.s32 0, %v2184
      %v2186 = vrot.slane %v2182, %v2185
      %2188 = vrot.lane.b32.xlu0 %v2186, 2
      %v2189 = vpop.permute.xlu0 %2188
      %v2191 = vmul.f32 %v707, %v2189
      %v2192 = vmul.f32 %v708, %v2189
      %v2193 = vmul.f32 %v709, %v2189
      %v2194 = vmul.f32 %v710, %v2189
      %2199 = vrot.lane.b32.xlu0 %v2191, 109
      %v2200 = vpop.permute.xlu0 %2199
      %2201 = vrot.lane.b32.xlu0 %v2192, 109
      %v2202 = vpop.permute.xlu0 %2201
      %2203 = vrot.lane.b32.xlu0 %v2193, 109
      %v2204 = vpop.permute.xlu0 %2203
      %2205 = vrot.lane.b32.xlu0 %v2194, 109
      %v2206 = vpop.permute.xlu0 %2205
      %vm2211 = vcmask 15360
      %v2212 = vsel %vm2211, %v2200, 0.0
      %2213 = vadd.xlane.f32.xlu0 %v2212
      %v2214 = vpop.xlane.xlu0 %2213
      %v2215 = vsel %vm2211, %v2202, 0.0
      %2216 = vadd.xlane.f32.xlu0 %v2215
      %v2217 = vpop.xlane.xlu0 %2216
      %v2218 = vsel %vm2211, %v2204, 0.0
      %2219 = vadd.xlane.f32.xlu0 %v2218
      %v2220 = vpop.xlane.xlu0 %2219
      %v2221 = vsel %vm2211, %v2206, 0.0
      %2222 = vadd.xlane.f32.xlu0 %v2221
      %v2223 = vpop.xlane.xlu0 %2222
      %v2224 = vadd.f32 %v2214, %v707
      %v2225 = vadd.f32 %v2217, %v708
      %v2226 = vadd.f32 %v2220, %v709
      %v2227 = vadd.f32 %v2223, %v710
      %v2228 = vxor.u32 %v2224, 2147483648
      %v2229 = vxor.u32 %v2225, 2147483648
      %v2230 = vxor.u32 %v2226, 2147483648
      %v2231 = vxor.u32 %v2227, 2147483648
      %v2232 = vmul.f32 %v2228, 1.442695
      %v2233 = vpow.pop %v2232
      %v2234 = vmul.f32 %v2229, 1.442695
      %v2235 = vpow.pop %v2234
      %v2236 = vmul.f32 %v2230, 1.442695
      %v2237 = vpow.pop %v2236
      %v2238 = vmul.f32 %v2231, 1.442695
      %v2239 = vpow.pop %v2238
      %v2240 = vadd.f32 %v2233, 1.0
      %v2241 = vadd.f32 %v2235, 1.0
      %v2242 = vadd.f32 %v2237, 1.0
      %v2243 = vadd.f32 %v2239, 1.0
      %v2244 = vrcp.pop %v2240
      %v2245 = vmul.f32 1.0, %v2244
      %v2246 = vrcp.pop %v2241
      %v2247 = vmul.f32 1.0, %v2246
      %v2248 = vrcp.pop %v2242
      %v2249 = vmul.f32 1.0, %v2248
      %v2250 = vrcp.pop %v2243
      %v2251 = vmul.f32 1.0, %v2250
      %2253 = vset.pattern.permute.xlu0 25
      %2254 = vperm.xlu0 %2253, %v2245
      %v2255 = vpop.permute.xlu0 %2254
      %2258 = vset.pattern.permute.xlu0 25
      %2259 = vperm.xlu0 %2258, %v2247
      %v2260 = vpop.permute.xlu0 %2259
      %2263 = vset.pattern.permute.xlu0 25
      %2264 = vperm.xlu0 %2263, %v2249
      %v2265 = vpop.permute.xlu0 %2264
      %2268 = vset.pattern.permute.xlu0 25
      %2269 = vperm.xlu0 %2268, %v2251
      %v2270 = vpop.permute.xlu0 %2269
      %v2272 = vmul.f32 %v2128, %v2255
      %v2273 = vmul.f32 %v2129, %v2255
      %v2274 = vmul.f32 %v2130, %v2260
      %v2275 = vmul.f32 %v2131, %v2260
      %v2276 = vmul.f32 %v2132, %v2265
      %v2277 = vmul.f32 %v2133, %v2265
      %v2278 = vmul.f32 %v2134, %v2270
      %v2279 = vmul.f32 %v2135, %v2270
      %v2280 = vld [vmem:[%s4] sm:$0xff]
      %2282 = vset.pattern.permute.xlu0 32
      %2283 = vperm.xlu0 %2282, %v2280
      %v2284 = vpop.permute.xlu0 %2283
      %vm2286 = vcmask 261120
      %v2287 = vsel %vm2286, %v2280, 0
      %2289 = vmatprep.subr.mxu0 0.0
      %2290 = vmatpush1.msra.mxu0 0.0
      %2291 = vmatprep.subr.mxu0 0.0
      %2292 = vmatpush1.msra.mxu0 0.0
      %2293 = vmatprep.subr.mxu0 0.0
      %2294 = vmatpush1.msra.mxu0 0.0
      %2295 = vmatprep.subr.mxu0 0.0
      %2296 = vmatpush1.msra.mxu0 0.0
      %2297 = vmatprep.subr.mxu0 0.0
      %2298 = vmatpush1.msra.mxu0 0.0
      %2299 = vmatprep.subr.mxu0 0.0
      %2300 = vmatpush1.msra.mxu0 0.0
      %2301 = vmatprep.subr.mxu0 0.0
      %2302 = vmatpush1.msra.mxu0 0.0
      %2303 = vmatprep.subr.mxu0 0.0
      %2304 = vmatpush1.msra.mxu0 0.0
      %2305 = vmatprep.subr.mxu0 0.0
      %2306 = vmatpush1.msra.mxu0 0.0
      %2307 = vmatprep.subr.mxu0 0.0
      %2308 = vmatpush1.msra.mxu0 0.0
      %2309 = vmatprep.subr.mxu0 0.0
      %2310 = vmatpush1.msra.mxu0 0.0
      %2311 = vmatprep.subr.mxu0 0.0
      %2312 = vmatpush1.msra.mxu0 0.0
      %v2313 = vand.u32 %v2279, 4294901760
      %2314 = vmatprep.subr.mxu0 %v2313
      %v2315 = vand.u32 %v2278, 4294901760
      %2316 = vmatpush1.msra.mxu0 %v2315
      %v2317 = vand.u32 %v2277, 4294901760
      %2318 = vmatprep.subr.mxu0 %v2317
      %v2319 = vand.u32 %v2276, 4294901760
      %2320 = vmatpush1.msra.mxu0 %v2319
      %v2321 = vand.u32 %v2275, 4294901760
      %2322 = vmatprep.subr.mxu0 %v2321
      %v2323 = vand.u32 %v2274, 4294901760
      %2324 = vmatpush1.msra.mxu0 %v2323
      %v2325 = vand.u32 %v2273, 4294901760
      %2326 = vmatprep.subr.mxu0 %v2325
      %v2327 = vand.u32 %v2272, 4294901760
      %2328 = vmatpush1.msra.mxu0 %v2327
      %2329 = vmatprep.subr.mxu0 0.0
      %2330 = vmatpush2.msra.mxu0 0.0
      %2331 = vmatprep.subr.mxu0 0.0
      %2332 = vmatpush2.msra.mxu0 0.0
      %2333 = vmatprep.subr.mxu0 0.0
      %2334 = vmatpush2.msra.mxu0 0.0
      %2335 = vmatprep.subr.mxu0 0.0
      %2336 = vmatpush2.msra.mxu0 0.0
      %2337 = vmatprep.subr.mxu0 0.0
      %2338 = vmatpush2.msra.mxu0 0.0
      %2339 = vmatprep.subr.mxu0 0.0
      %2340 = vmatpush2.msra.mxu0 0.0
      %2341 = vmatprep.subr.mxu0 0.0
      %2342 = vmatpush2.msra.mxu0 0.0
      %2343 = vmatprep.subr.mxu0 0.0
      %2344 = vmatpush2.msra.mxu0 0.0
      %2345 = vmatprep.subr.mxu0 0.0
      %2346 = vmatpush2.msra.mxu0 0.0
      %2347 = vmatprep.subr.mxu0 0.0
      %2348 = vmatpush2.msra.mxu0 0.0
      %2349 = vmatprep.subr.mxu0 0.0
      %2350 = vmatpush2.msra.mxu0 0.0
      %2351 = vmatprep.subr.mxu0 0.0
      %2352 = vmatpush2.msra.mxu0 0.0
      %2353 = vmatprep.subr.mxu0 0.0
      %2354 = vmatpush2.msra.mxu0 0.0
      %2355 = vmatprep.subr.mxu0 0.0
      %2356 = vmatpush2.msra.mxu0 0.0
      %2357 = vmatprep.subr.mxu0 0.0
      %2358 = vmatpush2.msra.mxu0 0.0
      %2359 = vmatprep.subr.mxu0 0.0
      %2360 = vmatpush2.msra.mxu0 0.0
      %2361 = vmatprep.mubr.f32.mxu0 0.0
      %v2362 = vand.u32 %v2287, 4294901760
      %v2363 = vsub.f32 %v2287, %v2362
      %v2364 = vand.u32 %v2363, 4294901760
      %v2365 = vsub.f32 %v2363, %v2364
      %v2366 = vand.u32 %v2365, 4294901760
      %2367 = vmatmul.mubr.f32.gmra.mxu0 %v2366
      %v2368 = vpop.f32.mrf.mxu0
      %v2369 = vadd.f32 %v2284, %v2368
      %v2370 = vpop.f32.mrf.mxu0
      %v2371 = vadd.f32 %v2284, %v2370
      %2372 = vdwg.mxu0
      %2373 = vmatprep.subr.mxu0 0.0
      %2374 = vmatpush1.msra.mxu0 0.0
      %2375 = vmatprep.subr.mxu0 0.0
      %2376 = vmatpush1.msra.mxu0 0.0
      %2377 = vmatprep.subr.mxu0 0.0
      %2378 = vmatpush1.msra.mxu0 0.0
      %2379 = vmatprep.subr.mxu0 0.0
      %2380 = vmatpush1.msra.mxu0 0.0
      %2381 = vmatprep.subr.mxu0 0.0
      %2382 = vmatpush1.msra.mxu0 0.0
      %2383 = vmatprep.subr.mxu0 0.0
      %2384 = vmatpush1.msra.mxu0 0.0
      %2385 = vmatprep.subr.mxu0 0.0
      %2386 = vmatpush1.msra.mxu0 0.0
      %2387 = vmatprep.subr.mxu0 0.0
      %2388 = vmatpush1.msra.mxu0 0.0
      %2389 = vmatprep.subr.mxu0 0.0
      %2390 = vmatpush1.msra.mxu0 0.0
      %2391 = vmatprep.subr.mxu0 0.0
      %2392 = vmatpush1.msra.mxu0 0.0
      %2393 = vmatprep.subr.mxu0 0.0
      %2394 = vmatpush1.msra.mxu0 0.0
      %2395 = vmatprep.subr.mxu0 0.0
      %2396 = vmatpush1.msra.mxu0 0.0
      %v2397 = vand.u32 %v2279, 4294901760
      %v2398 = vsub.f32 %v2279, %v2397
      %v2399 = vand.u32 %v2398, 4294901760
      %v2400 = vsub.f32 %v2398, %v2399
      %v2401 = vand.u32 %v2400, 4294901760
      %2402 = vmatprep.subr.mxu0 %v2401
      %v2403 = vand.u32 %v2278, 4294901760
      %v2404 = vsub.f32 %v2278, %v2403
      %v2405 = vand.u32 %v2404, 4294901760
      %v2406 = vsub.f32 %v2404, %v2405
      %v2407 = vand.u32 %v2406, 4294901760
      %2408 = vmatpush1.msra.mxu0 %v2407
      %v2409 = vand.u32 %v2277, 4294901760
      %v2410 = vsub.f32 %v2277, %v2409
      %v2411 = vand.u32 %v2410, 4294901760
      %v2412 = vsub.f32 %v2410, %v2411
      %v2413 = vand.u32 %v2412, 4294901760
      %2414 = vmatprep.subr.mxu0 %v2413
      %v2415 = vand.u32 %v2276, 4294901760
      %v2416 = vsub.f32 %v2276, %v2415
      %v2417 = vand.u32 %v2416, 4294901760
      %v2418 = vsub.f32 %v2416, %v2417
      %v2419 = vand.u32 %v2418, 4294901760
      %2420 = vmatpush1.msra.mxu0 %v2419
      %v2421 = vand.u32 %v2275, 4294901760
      %v2422 = vsub.f32 %v2275, %v2421
      %v2423 = vand.u32 %v2422, 4294901760
      %v2424 = vsub.f32 %v2422, %v2423
      %v2425 = vand.u32 %v2424, 4294901760
      %2426 = vmatprep.subr.mxu0 %v2425
      %v2427 = vand.u32 %v2274, 4294901760
      %v2428 = vsub.f32 %v2274, %v2427
      %v2429 = vand.u32 %v2428, 4294901760
      %v2430 = vsub.f32 %v2428, %v2429
      %v2431 = vand.u32 %v2430, 4294901760
      %2432 = vmatpush1.msra.mxu0 %v2431
      %v2433 = vand.u32 %v2273, 4294901760
      %v2434 = vsub.f32 %v2273, %v2433
      %v2435 = vand.u32 %v2434, 4294901760
      %v2436 = vsub.f32 %v2434, %v2435
      %v2437 = vand.u32 %v2436, 4294901760
      %2438 = vmatprep.subr.mxu0 %v2437
      %v2439 = vand.u32 %v2272, 4294901760
      %v2440 = vsub.f32 %v2272, %v2439
      %v2441 = vand.u32 %v2440, 4294901760
      %v2442 = vsub.f32 %v2440, %v2441
      %v2443 = vand.u32 %v2442, 4294901760
      %2444 = vmatpush1.msra.mxu0 %v2443
      %2445 = vmatprep.subr.mxu0 0.0
      %2446 = vmatpush2.msra.mxu0 0.0
      %2447 = vmatprep.subr.mxu0 0.0
      %2448 = vmatpush2.msra.mxu0 0.0
      %2449 = vmatprep.subr.mxu0 0.0
      %2450 = vmatpush2.msra.mxu0 0.0
      %2451 = vmatprep.subr.mxu0 0.0
      %2452 = vmatpush2.msra.mxu0 0.0
      %2453 = vmatprep.subr.mxu0 0.0
      %2454 = vmatpush2.msra.mxu0 0.0
      %2455 = vmatprep.subr.mxu0 0.0
      %2456 = vmatpush2.msra.mxu0 0.0
      %2457 = vmatprep.subr.mxu0 0.0
      %2458 = vmatpush2.msra.mxu0 0.0
      %2459 = vmatprep.subr.mxu0 0.0
      %2460 = vmatpush2.msra.mxu0 0.0
      %2461 = vmatprep.subr.mxu0 0.0
      %2462 = vmatpush2.msra.mxu0 0.0
      %2463 = vmatprep.subr.mxu0 0.0
      %2464 = vmatpush2.msra.mxu0 0.0
      %2465 = vmatprep.subr.mxu0 0.0
      %2466 = vmatpush2.msra.mxu0 0.0
      %2467 = vmatprep.subr.mxu0 0.0
      %2468 = vmatpush2.msra.mxu0 0.0
      %2469 = vmatprep.subr.mxu0 0.0
      %2470 = vmatpush2.msra.mxu0 0.0
      %2471 = vmatprep.subr.mxu0 0.0
      %2472 = vmatpush2.msra.mxu0 0.0
      %2473 = vmatprep.subr.mxu0 0.0
      %2474 = vmatpush2.msra.mxu0 0.0
      %2475 = vmatprep.subr.mxu0 0.0
      %2476 = vmatpush2.msra.mxu0 0.0
      %2477 = vmatprep.mubr.f32.mxu0 0.0
      %v2478 = vand.u32 %v2287, 4294901760
      %2479 = vmatmul.mubr.f32.gmra.mxu0 %v2478
      %v2480 = vpop.f32.mrf.mxu0
      %v2481 = vadd.f32 %v2369, %v2480
      %v2482 = vpop.f32.mrf.mxu0
      %v2483 = vadd.f32 %v2371, %v2482
      %2484 = vdwg.mxu0
      %2485 = vmatprep.subr.mxu0 0.0
      %2486 = vmatpush1.msra.mxu0 0.0
      %2487 = vmatprep.subr.mxu0 0.0
      %2488 = vmatpush1.msra.mxu0 0.0
      %2489 = vmatprep.subr.mxu0 0.0
      %2490 = vmatpush1.msra.mxu0 0.0
      %2491 = vmatprep.subr.mxu0 0.0
      %2492 = vmatpush1.msra.mxu0 0.0
      %2493 = vmatprep.subr.mxu0 0.0
      %2494 = vmatpush1.msra.mxu0 0.0
      %2495 = vmatprep.subr.mxu0 0.0
      %2496 = vmatpush1.msra.mxu0 0.0
      %2497 = vmatprep.subr.mxu0 0.0
      %2498 = vmatpush1.msra.mxu0 0.0
      %2499 = vmatprep.subr.mxu0 0.0
      %2500 = vmatpush1.msra.mxu0 0.0
      %2501 = vmatprep.subr.mxu0 0.0
      %2502 = vmatpush1.msra.mxu0 0.0
      %2503 = vmatprep.subr.mxu0 0.0
      %2504 = vmatpush1.msra.mxu0 0.0
      %2505 = vmatprep.subr.mxu0 0.0
      %2506 = vmatpush1.msra.mxu0 0.0
      %2507 = vmatprep.subr.mxu0 0.0
      %2508 = vmatpush1.msra.mxu0 0.0
      %v2509 = vand.u32 %v2279, 4294901760
      %v2510 = vsub.f32 %v2279, %v2509
      %2511 = vmatprep.subr.mxu0 %v2510
      %v2512 = vand.u32 %v2278, 4294901760
      %v2513 = vsub.f32 %v2278, %v2512
      %2514 = vmatpush1.msra.mxu0 %v2513
      %v2515 = vand.u32 %v2277, 4294901760
      %v2516 = vsub.f32 %v2277, %v2515
      %2517 = vmatprep.subr.mxu0 %v2516
      %v2518 = vand.u32 %v2276, 4294901760
      %v2519 = vsub.f32 %v2276, %v2518
      %2520 = vmatpush1.msra.mxu0 %v2519
      %v2521 = vand.u32 %v2275, 4294901760
      %v2522 = vsub.f32 %v2275, %v2521
      %2523 = vmatprep.subr.mxu0 %v2522
      %v2524 = vand.u32 %v2274, 4294901760
      %v2525 = vsub.f32 %v2274, %v2524
      %2526 = vmatpush1.msra.mxu0 %v2525
      %v2527 = vand.u32 %v2273, 4294901760
      %v2528 = vsub.f32 %v2273, %v2527
      %2529 = vmatprep.subr.mxu0 %v2528
      %v2530 = vand.u32 %v2272, 4294901760
      %v2531 = vsub.f32 %v2272, %v2530
      %2532 = vmatpush1.msra.mxu0 %v2531
      %2533 = vmatprep.subr.mxu0 0.0
      %2534 = vmatpush2.msra.mxu0 0.0
      %2535 = vmatprep.subr.mxu0 0.0
      %2536 = vmatpush2.msra.mxu0 0.0
      %2537 = vmatprep.subr.mxu0 0.0
      %2538 = vmatpush2.msra.mxu0 0.0
      %2539 = vmatprep.subr.mxu0 0.0
      %2540 = vmatpush2.msra.mxu0 0.0
      %2541 = vmatprep.subr.mxu0 0.0
      %2542 = vmatpush2.msra.mxu0 0.0
      %2543 = vmatprep.subr.mxu0 0.0
      %2544 = vmatpush2.msra.mxu0 0.0
      %2545 = vmatprep.subr.mxu0 0.0
      %2546 = vmatpush2.msra.mxu0 0.0
      %2547 = vmatprep.subr.mxu0 0.0
      %2548 = vmatpush2.msra.mxu0 0.0
      %2549 = vmatprep.subr.mxu0 0.0
      %2550 = vmatpush2.msra.mxu0 0.0
      %2551 = vmatprep.subr.mxu0 0.0
      %2552 = vmatpush2.msra.mxu0 0.0
      %2553 = vmatprep.subr.mxu0 0.0
      %2554 = vmatpush2.msra.mxu0 0.0
      %2555 = vmatprep.subr.mxu0 0.0
      %2556 = vmatpush2.msra.mxu0 0.0
      %2557 = vmatprep.subr.mxu0 0.0
      %2558 = vmatpush2.msra.mxu0 0.0
      %2559 = vmatprep.subr.mxu0 0.0
      %2560 = vmatpush2.msra.mxu0 0.0
      %2561 = vmatprep.subr.mxu0 0.0
      %2562 = vmatpush2.msra.mxu0 0.0
      %2563 = vmatprep.subr.mxu0 0.0
      %2564 = vmatpush2.msra.mxu0 0.0
      %2565 = vmatprep.mubr.f32.mxu0 0.0
      %v2566 = vand.u32 %v2287, 4294901760
      %v2567 = vsub.f32 %v2287, %v2566
      %2568 = vmatmul.mubr.f32.gmra.mxu0 %v2567
      %v2569 = vpop.f32.mrf.mxu0
      %v2570 = vadd.f32 %v2481, %v2569
      %v2571 = vpop.f32.mrf.mxu0
      %v2572 = vadd.f32 %v2483, %v2571
      %2573 = vdwg.mxu0
      %2574 = vmatprep.subr.mxu0 0.0
      %2575 = vmatpush1.msra.mxu0 0.0
      %2576 = vmatprep.subr.mxu0 0.0
      %2577 = vmatpush1.msra.mxu0 0.0
      %2578 = vmatprep.subr.mxu0 0.0
      %2579 = vmatpush1.msra.mxu0 0.0
      %2580 = vmatprep.subr.mxu0 0.0
      %2581 = vmatpush1.msra.mxu0 0.0
      %2582 = vmatprep.subr.mxu0 0.0
      %2583 = vmatpush1.msra.mxu0 0.0
      %2584 = vmatprep.subr.mxu0 0.0
      %2585 = vmatpush1.msra.mxu0 0.0
      %2586 = vmatprep.subr.mxu0 0.0
      %2587 = vmatpush1.msra.mxu0 0.0
      %2588 = vmatprep.subr.mxu0 0.0
      %2589 = vmatpush1.msra.mxu0 0.0
      %2590 = vmatprep.subr.mxu0 0.0
      %2591 = vmatpush1.msra.mxu0 0.0
      %2592 = vmatprep.subr.mxu0 0.0
      %2593 = vmatpush1.msra.mxu0 0.0
      %2594 = vmatprep.subr.mxu0 0.0
      %2595 = vmatpush1.msra.mxu0 0.0
      %2596 = vmatprep.subr.mxu0 0.0
      %2597 = vmatpush1.msra.mxu0 0.0
      %v2598 = vand.u32 %v2279, 4294901760
      %2599 = vmatprep.subr.mxu0 %v2598
      %v2600 = vand.u32 %v2278, 4294901760
      %2601 = vmatpush1.msra.mxu0 %v2600
      %v2602 = vand.u32 %v2277, 4294901760
      %2603 = vmatprep.subr.mxu0 %v2602
      %v2604 = vand.u32 %v2276, 4294901760
      %2605 = vmatpush1.msra.mxu0 %v2604
      %v2606 = vand.u32 %v2275, 4294901760
      %2607 = vmatprep.subr.mxu0 %v2606
      %v2608 = vand.u32 %v2274, 4294901760
      %2609 = vmatpush1.msra.mxu0 %v2608
      %v2610 = vand.u32 %v2273, 4294901760
      %2611 = vmatprep.subr.mxu0 %v2610
      %v2612 = vand.u32 %v2272, 4294901760
      %2613 = vmatpush1.msra.mxu0 %v2612
      %2614 = vmatprep.subr.mxu0 0.0
      %2615 = vmatpush2.msra.mxu0 0.0
      %2616 = vmatprep.subr.mxu0 0.0
      %2617 = vmatpush2.msra.mxu0 0.0
      %2618 = vmatprep.subr.mxu0 0.0
      %2619 = vmatpush2.msra.mxu0 0.0
      %2620 = vmatprep.subr.mxu0 0.0
      %2621 = vmatpush2.msra.mxu0 0.0
      %2622 = vmatprep.subr.mxu0 0.0
      %2623 = vmatpush2.msra.mxu0 0.0
      %2624 = vmatprep.subr.mxu0 0.0
      %2625 = vmatpush2.msra.mxu0 0.0
      %2626 = vmatprep.subr.mxu0 0.0
      %2627 = vmatpush2.msra.mxu0 0.0
      %2628 = vmatprep.subr.mxu0 0.0
      %2629 = vmatpush2.msra.mxu0 0.0
      %2630 = vmatprep.subr.mxu0 0.0
      %2631 = vmatpush2.msra.mxu0 0.0
      %2632 = vmatprep.subr.mxu0 0.0
      %2633 = vmatpush2.msra.mxu0 0.0
      %2634 = vmatprep.subr.mxu0 0.0
      %2635 = vmatpush2.msra.mxu0 0.0
      %2636 = vmatprep.subr.mxu0 0.0
      %2637 = vmatpush2.msra.mxu0 0.0
      %2638 = vmatprep.subr.mxu0 0.0
      %2639 = vmatpush2.msra.mxu0 0.0
      %2640 = vmatprep.subr.mxu0 0.0
      %2641 = vmatpush2.msra.mxu0 0.0
      %2642 = vmatprep.subr.mxu0 0.0
      %2643 = vmatpush2.msra.mxu0 0.0
      %2644 = vmatprep.subr.mxu0 0.0
      %2645 = vmatpush2.msra.mxu0 0.0
      %2646 = vmatprep.mubr.f32.mxu0 0.0
      %v2647 = vand.u32 %v2287, 4294901760
      %v2648 = vsub.f32 %v2287, %v2647
      %v2649 = vand.u32 %v2648, 4294901760
      %2650 = vmatmul.mubr.f32.gmra.mxu0 %v2649
      %v2651 = vpop.f32.mrf.mxu0
      %v2652 = vadd.f32 %v2570, %v2651
      %v2653 = vpop.f32.mrf.mxu0
      %v2654 = vadd.f32 %v2572, %v2653
      %2655 = vdwg.mxu0
      %2656 = vmatprep.subr.mxu0 0.0
      %2657 = vmatpush1.msra.mxu0 0.0
      %2658 = vmatprep.subr.mxu0 0.0
      %2659 = vmatpush1.msra.mxu0 0.0
      %2660 = vmatprep.subr.mxu0 0.0
      %2661 = vmatpush1.msra.mxu0 0.0
      %2662 = vmatprep.subr.mxu0 0.0
      %2663 = vmatpush1.msra.mxu0 0.0
      %2664 = vmatprep.subr.mxu0 0.0
      %2665 = vmatpush1.msra.mxu0 0.0
      %2666 = vmatprep.subr.mxu0 0.0
      %2667 = vmatpush1.msra.mxu0 0.0
      %2668 = vmatprep.subr.mxu0 0.0
      %2669 = vmatpush1.msra.mxu0 0.0
      %2670 = vmatprep.subr.mxu0 0.0
      %2671 = vmatpush1.msra.mxu0 0.0
      %2672 = vmatprep.subr.mxu0 0.0
      %2673 = vmatpush1.msra.mxu0 0.0
      %2674 = vmatprep.subr.mxu0 0.0
      %2675 = vmatpush1.msra.mxu0 0.0
      %2676 = vmatprep.subr.mxu0 0.0
      %2677 = vmatpush1.msra.mxu0 0.0
      %2678 = vmatprep.subr.mxu0 0.0
      %2679 = vmatpush1.msra.mxu0 0.0
      %v2680 = vand.u32 %v2279, 4294901760
      %v2681 = vsub.f32 %v2279, %v2680
      %v2682 = vand.u32 %v2681, 4294901760
      %2683 = vmatprep.subr.mxu0 %v2682
      %v2684 = vand.u32 %v2278, 4294901760
      %v2685 = vsub.f32 %v2278, %v2684
      %v2686 = vand.u32 %v2685, 4294901760
      %2687 = vmatpush1.msra.mxu0 %v2686
      %v2688 = vand.u32 %v2277, 4294901760
      %v2689 = vsub.f32 %v2277, %v2688
      %v2690 = vand.u32 %v2689, 4294901760
      %2691 = vmatprep.subr.mxu0 %v2690
      %v2692 = vand.u32 %v2276, 4294901760
      %v2693 = vsub.f32 %v2276, %v2692
      %v2694 = vand.u32 %v2693, 4294901760
      %2695 = vmatpush1.msra.mxu0 %v2694
      %v2696 = vand.u32 %v2275, 4294901760
      %v2697 = vsub.f32 %v2275, %v2696
      %v2698 = vand.u32 %v2697, 4294901760
      %2699 = vmatprep.subr.mxu0 %v2698
      %v2700 = vand.u32 %v2274, 4294901760
      %v2701 = vsub.f32 %v2274, %v2700
      %v2702 = vand.u32 %v2701, 4294901760
      %2703 = vmatpush1.msra.mxu0 %v2702
      %v2704 = vand.u32 %v2273, 4294901760
      %v2705 = vsub.f32 %v2273, %v2704
      %v2706 = vand.u32 %v2705, 4294901760
      %2707 = vmatprep.subr.mxu0 %v2706
      %v2708 = vand.u32 %v2272, 4294901760
      %v2709 = vsub.f32 %v2272, %v2708
      %v2710 = vand.u32 %v2709, 4294901760
      %2711 = vmatpush1.msra.mxu0 %v2710
      %2712 = vmatprep.subr.mxu0 0.0
      %2713 = vmatpush2.msra.mxu0 0.0
      %2714 = vmatprep.subr.mxu0 0.0
      %2715 = vmatpush2.msra.mxu0 0.0
      %2716 = vmatprep.subr.mxu0 0.0
      %2717 = vmatpush2.msra.mxu0 0.0
      %2718 = vmatprep.subr.mxu0 0.0
      %2719 = vmatpush2.msra.mxu0 0.0
      %2720 = vmatprep.subr.mxu0 0.0
      %2721 = vmatpush2.msra.mxu0 0.0
      %2722 = vmatprep.subr.mxu0 0.0
      %2723 = vmatpush2.msra.mxu0 0.0
      %2724 = vmatprep.subr.mxu0 0.0
      %2725 = vmatpush2.msra.mxu0 0.0
      %2726 = vmatprep.subr.mxu0 0.0
      %2727 = vmatpush2.msra.mxu0 0.0
      %2728 = vmatprep.subr.mxu0 0.0
      %2729 = vmatpush2.msra.mxu0 0.0
      %2730 = vmatprep.subr.mxu0 0.0
      %2731 = vmatpush2.msra.mxu0 0.0
      %2732 = vmatprep.subr.mxu0 0.0
      %2733 = vmatpush2.msra.mxu0 0.0
      %2734 = vmatprep.subr.mxu0 0.0
      %2735 = vmatpush2.msra.mxu0 0.0
      %2736 = vmatprep.subr.mxu0 0.0
      %2737 = vmatpush2.msra.mxu0 0.0
      %2738 = vmatprep.subr.mxu0 0.0
      %2739 = vmatpush2.msra.mxu0 0.0
      %2740 = vmatprep.subr.mxu0 0.0
      %2741 = vmatpush2.msra.mxu0 0.0
      %2742 = vmatprep.subr.mxu0 0.0
      %2743 = vmatpush2.msra.mxu0 0.0
      %2744 = vmatprep.mubr.f32.mxu0 0.0
      %v2745 = vand.u32 %v2287, 4294901760
      %2746 = vmatmul.mubr.f32.gmra.mxu0 %v2745
      %v2747 = vpop.f32.mrf.mxu0
      %v2748 = vadd.f32 %v2652, %v2747
      %v2749 = vpop.f32.mrf.mxu0
      %v2750 = vadd.f32 %v2654, %v2749
      %2751 = vdwg.mxu0
      %2752 = vmatprep.subr.mxu0 0.0
      %2753 = vmatpush1.msra.mxu0 0.0
      %2754 = vmatprep.subr.mxu0 0.0
      %2755 = vmatpush1.msra.mxu0 0.0
      %2756 = vmatprep.subr.mxu0 0.0
      %2757 = vmatpush1.msra.mxu0 0.0
      %2758 = vmatprep.subr.mxu0 0.0
      %2759 = vmatpush1.msra.mxu0 0.0
      %2760 = vmatprep.subr.mxu0 0.0
      %2761 = vmatpush1.msra.mxu0 0.0
      %2762 = vmatprep.subr.mxu0 0.0
      %2763 = vmatpush1.msra.mxu0 0.0
      %2764 = vmatprep.subr.mxu0 0.0
      %2765 = vmatpush1.msra.mxu0 0.0
      %2766 = vmatprep.subr.mxu0 0.0
      %2767 = vmatpush1.msra.mxu0 0.0
      %2768 = vmatprep.subr.mxu0 0.0
      %2769 = vmatpush1.msra.mxu0 0.0
      %2770 = vmatprep.subr.mxu0 0.0
      %2771 = vmatpush1.msra.mxu0 0.0
      %2772 = vmatprep.subr.mxu0 0.0
      %2773 = vmatpush1.msra.mxu0 0.0
      %2774 = vmatprep.subr.mxu0 0.0
      %2775 = vmatpush1.msra.mxu0 0.0
      %v2776 = vand.u32 %v2279, 4294901760
      %2777 = vmatprep.subr.mxu0 %v2776
      %v2778 = vand.u32 %v2278, 4294901760
      %2779 = vmatpush1.msra.mxu0 %v2778
      %v2780 = vand.u32 %v2277, 4294901760
      %2781 = vmatprep.subr.mxu0 %v2780
      %v2782 = vand.u32 %v2276, 4294901760
      %2783 = vmatpush1.msra.mxu0 %v2782
      %v2784 = vand.u32 %v2275, 4294901760
      %2785 = vmatprep.subr.mxu0 %v2784
      %v2786 = vand.u32 %v2274, 4294901760
      %2787 = vmatpush1.msra.mxu0 %v2786
      %v2788 = vand.u32 %v2273, 4294901760
      %2789 = vmatprep.subr.mxu0 %v2788
      %v2790 = vand.u32 %v2272, 4294901760
      %2791 = vmatpush1.msra.mxu0 %v2790
      %2792 = vmatprep.subr.mxu0 0.0
      %2793 = vmatpush2.msra.mxu0 0.0
      %2794 = vmatprep.subr.mxu0 0.0
      %2795 = vmatpush2.msra.mxu0 0.0
      %2796 = vmatprep.subr.mxu0 0.0
      %2797 = vmatpush2.msra.mxu0 0.0
      %2798 = vmatprep.subr.mxu0 0.0
      %2799 = vmatpush2.msra.mxu0 0.0
      %2800 = vmatprep.subr.mxu0 0.0
      %2801 = vmatpush2.msra.mxu0 0.0
      %2802 = vmatprep.subr.mxu0 0.0
      %2803 = vmatpush2.msra.mxu0 0.0
      %2804 = vmatprep.subr.mxu0 0.0
      %2805 = vmatpush2.msra.mxu0 0.0
      %2806 = vmatprep.subr.mxu0 0.0
      %2807 = vmatpush2.msra.mxu0 0.0
      %2808 = vmatprep.subr.mxu0 0.0
      %2809 = vmatpush2.msra.mxu0 0.0
      %2810 = vmatprep.subr.mxu0 0.0
      %2811 = vmatpush2.msra.mxu0 0.0
      %2812 = vmatprep.subr.mxu0 0.0
      %2813 = vmatpush2.msra.mxu0 0.0
      %2814 = vmatprep.subr.mxu0 0.0
      %2815 = vmatpush2.msra.mxu0 0.0
      %2816 = vmatprep.subr.mxu0 0.0
      %2817 = vmatpush2.msra.mxu0 0.0
      %2818 = vmatprep.subr.mxu0 0.0
      %2819 = vmatpush2.msra.mxu0 0.0
      %2820 = vmatprep.subr.mxu0 0.0
      %2821 = vmatpush2.msra.mxu0 0.0
      %2822 = vmatprep.subr.mxu0 0.0
      %2823 = vmatpush2.msra.mxu0 0.0
      %2824 = vmatprep.mubr.f32.mxu0 0.0
      %v2825 = vand.u32 %v2287, 4294901760
      %2826 = vmatmul.mubr.f32.gmra.mxu0 %v2825
      %v2827 = vpop.f32.mrf.mxu0
      %v2828 = vadd.f32 %v2748, %v2827
      %v2829 = vpop.f32.mrf.mxu0
      %v2830 = vadd.f32 %v2750, %v2829
      %2831 = vdwg.mxu0
      %v2832 = vadd.f32 %v2828, %v705
      %v2833 = vadd.f32 %v2830, %v706
      %2834 = vst [vmem:[%s224] sm:$0xff] %v2832
      %2835 = vst [vmem:[%s224 + $0x8] sm:$0xff] %v2833
      %p2836 = scmp.lt.s32.totalorder %s16, 1
      %s2837 = scalar_select %p2836, %s16, 1
      %s2838 = smul.addr %s2837, 2
      %s2839 = smul.addr %s2838, 8
      %s2840 = scalar_lea.vmem %s5, %s2839
      // Predicated region
      $region41: #{_enc_mbconv_forward.1} parent=39 // pred_check
        %p2841 = pneg %p144
      $region42: #{_enc_mbconv_forward.1} parent=39 // pred_check_branch
        %2843 = sbr.rel (%p2841) target = $region44
      $region43: #{_enc_mbconv_forward.1} parent=39 // pred_region
        _
      $region44: #{_enc_mbconv_forward.1} parent=39 // pred_fallthru
        _
    $region40: #{_enc_mbconv_forward.1} parent=5 // pred_fallthru
      _
    %p2844 = scmp.le.s32.totalorder 2, %s11
    // Predicated region
    $region45: #{_enc_mbconv_forward.1} parent=5 // pred_check
      %p2845 = pneg %p2844
    $region46: #{_enc_mbconv_forward.1} parent=5 // pred_check_branch
      %2847 = sbr.rel (%p2845) target = $region48
    $region47: #{_enc_mbconv_forward.1} parent=5 // pred_region
      %s2848 = ssub.s32 %s11, 2
      // Predicated region
      $region49: #{_enc_mbconv_forward.1} parent=47 // pred_check
        %p2849 = pneg %p150
      $region50: #{_enc_mbconv_forward.1} parent=47 // pred_check_branch
        %2851 = sbr.rel (%p2849) target = $region52
      $region51: #{_enc_mbconv_forward.1} parent=47 // pred_region
        %p2852 = scmp.lt.s32.totalorder %s17, 1
        %s2853 = scalar_select %p2852, %s17, 1
        %s2854 = smul.addr %s2853, 2
        %s2855 = smul.addr %s2854, 8
        %s2856 = scalar_lea.vmem %s5, %s2855
      $region52: #{_enc_mbconv_forward.1} parent=47 // pred_fallthru
        _
    $region48: #{_enc_mbconv_forward.1} parent=5 // pred_fallthru
      _
  $region6: #{_enc_mbconv_forward.1} parent=0 // loop_footer
    %s15 = sadd.s32 1, %s11
  $region7: #{_enc_mbconv_forward.1} parent=0 // loop_footer_branch
    %10 = sbr.rel target = $region3
  $region8: #{_enc_mbconv_forward.1} parent=0 // loop_exit
    _

</llo_original>
